<compile_context>
chip_gen: v7x
topology: tpu7x:2x2x1
jax: 0.10.0
libtpu: 0.0.40
codegen_flags: <defaults>
</compile_context>

<pallas_src>
import functools

import jax
import jax.numpy as jnp
import numpy as np
from jax.experimental import pallas as pl
from jax.experimental.pallas import tpu as pltpu

H_FIXED = 7  # the PyTorch forward hard-codes .view(B, C, 7, 7)
W_FIXED = 7


# ----------------------------------------------------------------------------
# Fused Pallas kernel
# ----------------------------------------------------------------------------
def _fused_doublenet_kernel(x_ref, y_ref, wdw_ref, bdw_ref, wpw_ref, bpw_ref,
                            fea1_ref, fea2_ref, res1_ref, res2_ref,
                            *, B, C, H, W):
    """Whole DoubleNet forward in one body.

    x_ref, y_ref : (B, H, W*C)  lane-dense NHWC slabs (f32)
    wdw_ref      : (9, W*C)     depthwise 3x3 taps, lane-tiled (f32)
    bdw_ref      : (1, W*C)     depthwise bias, lane-tiled (f32)
    wpw_ref      : (W*C, W*C)   block-diagonal pointwise 1x1 weight (bf16)
    bpw_ref      : (1, W*C)     pointwise bias, lane-tiled (f32)
    outputs      : fea1, fea2, res1, res2 -- each (B, C) f32
    """
    WC = W * C
    Hp = H + 2
    inv_hw = 1.0 / (H * W)

    # Hoisted weight / bias loads (sliced per tap below; no per-tap VMEM loads).
    wdw = wdw_ref[...]           # (9, WC)
    bdw = bdw_ref[...]           # (1, WC)
    wpw = wpw_ref[...]           # (WC, WC) bf16
    bpw = bpw_ref[...]           # (1, WC)

    def pool_hw(v):
        # (B, H, W*C) -> (B, C): sum over W (lane groups of C) then H (sublanes).
        acc = v[:, :, 0:C]
        for w in range(1, W):
            acc = acc + v[:, :, w * C:(w + 1) * C]
        return acc.sum(axis=1)

    def embed(img_ref):
        img = img_ref[...]                                       # (B, H, WC)
        # In-kernel zero padding: +1 H row each side (sublanes), +1 W group
        # (= C lanes) each side of the lane axis.  No jnp.pad in the wrapper.
        zrow = jnp.zeros((B, 1, WC), jnp.float32)
        zcol = jnp.zeros((B, Hp, C), jnp.float32)
        xp = jnp.concatenate([zrow, img, zrow], axis=1)          # (B, Hp, WC)
        xp = jnp.concatenate([zcol, xp, zcol], axis=2)           # (B, Hp, Wp*C)

        # Depthwise 3x3: nine shifted MACs on lane-dense slabs
        # (kh = sublane offset, kw = lane offset of kw*C).
        acc = jnp.zeros((B, H, WC), jnp.float32)
        for kh in range(3):
            for kw in range(3):
                k = kh * 3 + kw
                acc = acc + xp[:, kh:kh + H, kw * C:kw * C + WC] * wdw[k:k + 1]
        x1 = jnp.maximum(acc + bdw, 0.0)                         # (B, H, WC)

        fea = pool_hw(x1) * inv_hw                               # (B, C)

        # Pointwise 1x1 conv: single MXU matmul against the block-diagonal
        # weight (bf16 operands, f32 accumulation); stays in slab layout.
        t2d = jnp.dot(x1.reshape(B * H, WC).astype(jnp.bfloat16), wpw,
                      preferred_element_type=jnp.float32)        # (B*H, WC)
        t = t2d.reshape(B, H, WC) + bpw                          # (B, H, WC)
        return x1, fea, t

    x1, fea1, t1 = embed(x_ref)
    y1, fea2, t2 = embed(y_ref)

    # DoubleNet hot path: wxy = |t1 - t2|; res = spatial mean of x1*wxy / y1*wxy.
    wxy = jnp.abs(t1 - t2)
    fea1_ref[...] = fea1
    fea2_ref[...] = fea2
    res1_ref[...] = pool_hw(x1 * wxy) * inv_hw
    res2_ref[...] = pool_hw(y1 * wxy) * inv_hw


def _fused_call(B, C, H, W):
    vmem = pl.BlockSpec(memory_space=pltpu.MemorySpace.VMEM)
    kernel = functools.partial(_fused_doublenet_kernel, B=B, C=C, H=H, W=W)
    # Whole problem (~50 KB) fits VMEM trivially -> no grid.
    # TODO(synk): for large B on v7x, add a batch grid axis with
    # dimension_semantics=("parallel",) so both TensorCores get work.
    return pl.pallas_call(
        kernel,
        out_shape=tuple(jax.ShapeDtypeStruct((B, C), jnp.float32)
                        for _ in range(4)),
        in_specs=[vmem] * 6,
        out_specs=tuple([vmem] * 4),
    )


# ----------------------------------------------------------------------------
# Wrapper (layout plumbing + tiny weight prep only)
# ----------------------------------------------------------------------------
@jax.jit
def doublenet_forward(x_nchw, y_nchw, params):
    """Mirrors DoubleNet.forward: returns (fea1, fea2, res1, res2)."""
    B, C, H, W = x_nchw.shape
    assert (H, W) == (H_FIXED, W_FIXED), "DoubleNet.forward hard-codes 7x7 maps"
    WC = W * C

    # NCHW -> lane-dense NHWC slab (B, H, W*C): one fused XLA copy per input.
    def to_slab(a):
        return jnp.transpose(a, (0, 2, 3, 1)).astype(jnp.float32).reshape(B, H, WC)

    # Tiny per-call weight prep (a few KB): lane-tile depthwise taps / biases,
    # and expand the 1x1 pointwise weight to a block-diagonal (WC, WC) matrix
    # so the kernel runs the pointwise conv as one lane-dense matmul.
    w_dw_t = jnp.tile(params["w_dw"].astype(jnp.float32), (1, W))     # (9, WC)
    b_dw_t = jnp.tile(params["b_dw"].astype(jnp.float32), (1, W))     # (1, WC)
    w_pw_bd = jnp.kron(jnp.eye(W, dtype=jnp.float32),
                       params["w_pw"].astype(jnp.float32)).astype(jnp.bfloat16)
    b_pw_t = jnp.tile(params["b_pw"].astype(jnp.float32), (1, W))     # (1, WC)

    return _fused_call(B, C, H, W)(to_slab(x_nchw), to_slab(y_nchw),
                                   w_dw_t, b_dw_t, w_pw_bd, b_pw_t)


# ----------------------------------------------------------------------------
# Pure-JAX reference (same math: f32 everywhere, bf16 matmul operands)
# ----------------------------------------------------------------------------
def reference_forward(x_nchw, y_nchw, params):
    w_dw = params["w_dw"].astype(jnp.float32)
    b_dw = params["b_dw"].astype(jnp.float32)
    w_pw = params["w_pw"].astype(jnp.float32)
    b_pw = params["b_pw"].astype(jnp.float32)

    def emb(xn):
        x = jnp.transpose(xn, (0, 2, 3, 1)).astype(jnp.float32)   # NHWC
        B, H, W, C = x.shape
        xp = jnp.pad(x, ((0, 0), (1, 1), (1, 1), (0, 0)))
        acc = jnp.zeros_like(x)
        for kh in range(3):
            for kw in range(3):
                wk = w_dw[kh * 3 + kw].reshape(1, 1, 1, C)
                acc = acc + xp[:, kh:kh + H, kw:kw + W, :] * wk
        x1 = jnp.maximum(acc + b_dw.reshape(1, 1, 1, C), 0.0)
        fea = x1.mean(axis=(1, 2))
        t = jnp.einsum("bhwc,cd->bhwd",
                       x1.astype(jnp.bfloat16), w_pw.astype(jnp.bfloat16),
                       preferred_element_type=jnp.float32) \
            + b_pw.reshape(1, 1, 1, C)
        return x1, fea, t

    x1, fea1, t1 = emb(x_nchw)
    y1, fea2, t2 = emb(y_nchw)
    wxy = jnp.abs(t1 - t2)
    res1 = (x1 * wxy).mean(axis=(1, 2))
    res2 = (y1 * wxy).mean(axis=(1, 2))
    return fea1, fea2, res1, res2


# ----------------------------------------------------------------------------
if __name__ == "__main__":
    B, C, H, W = 2, 16, 7, 7            # 7x7 spatial is required by the module
    key = jax.random.PRNGKey(0)
    kx, ky, k1, k2, k3, k4 = jax.random.split(key, 6)

    # Anchor / negative images, NCHW like the PyTorch module expects.
    x = jax.random.normal(kx, (B, C, H, W), jnp.float32)
    y = jax.random.normal(ky, (B, C, H, W), jnp.float32)

    # Deterministic synthetic embedding-net parameters.
    params = {
        "w_dw": jax.random.normal(k1, (9, C), jnp.float32) * 0.3,
        "b_dw": jax.random.normal(k2, (1, C), jnp.float32) * 0.1,
        "w_pw": jax.random.normal(k3, (C, C), jnp.float32) / np.sqrt(C),
        "b_pw": jax.random.normal(k4, (1, C), jnp.float32) * 0.1,
    }

    outs = jax.block_until_ready(doublenet_forward(x, y, params))
    refs = reference_forward(x, y, params)
    for o, r in zip(outs, refs):
        np.testing.assert_allclose(np.asarray(o), np.asarray(r),
                                   rtol=1e-3, atol=1e-3)
    print("KERNEL_OK")
</pallas_src>

<mosaic_0001>
module attributes {stable_mosaic.version = 11 : i64} {
  func.func @_fused_doublenet_kernel(%arg0: memref<2x7x112xf32, #tpu.memory_space<vmem>>, %arg1: memref<2x7x112xf32, #tpu.memory_space<vmem>>, %arg2: memref<9x112xf32, #tpu.memory_space<vmem>>, %arg3: memref<1x112xf32, #tpu.memory_space<vmem>>, %arg4: memref<112x112xbf16, #tpu.memory_space<vmem>>, %arg5: memref<1x112xf32, #tpu.memory_space<vmem>>, %arg6: memref<2x16xf32, #tpu.memory_space<vmem>>, %arg7: memref<2x16xf32, #tpu.memory_space<vmem>>, %arg8: memref<2x16xf32, #tpu.memory_space<vmem>>, %arg9: memref<2x16xf32, #tpu.memory_space<vmem>>) attributes {dimension_semantics = [], scalar_prefetch = 0 : i64, scratch_operands = 0 : i64, tpu.core_type = #tpu.core_type<tc>} {
    %c0 = arith.constant 0 : index
    %c0_0 = arith.constant 0 : index
    %0 = vector.load %arg2[%c0, %c0_0] : memref<9x112xf32, #tpu.memory_space<vmem>>, vector<9x112xf32>
    %c0_1 = arith.constant 0 : index
    %c0_2 = arith.constant 0 : index
    %1 = vector.load %arg3[%c0_1, %c0_2] : memref<1x112xf32, #tpu.memory_space<vmem>>, vector<1x112xf32>
    %c0_3 = arith.constant 0 : index
    %c0_4 = arith.constant 0 : index
    %2 = vector.load %arg4[%c0_3, %c0_4] : memref<112x112xbf16, #tpu.memory_space<vmem>>, vector<112x112xbf16>
    %c0_5 = arith.constant 0 : index
    %c0_6 = arith.constant 0 : index
    %3 = vector.load %arg5[%c0_5, %c0_6] : memref<1x112xf32, #tpu.memory_space<vmem>>, vector<1x112xf32>
    %c0_7 = arith.constant 0 : index
    %c0_8 = arith.constant 0 : index
    %c0_9 = arith.constant 0 : index
    %4 = vector.load %arg0[%c0_7, %c0_8, %c0_9] : memref<2x7x112xf32, #tpu.memory_space<vmem>>, vector<2x7x112xf32>
    %cst = arith.constant 0.000000e+00 : f32
    %5 = vector.broadcast %cst : f32 to vector<2x1x112xf32>
    %cst_10 = arith.constant 0.000000e+00 : f32
    %6 = vector.broadcast %cst_10 : f32 to vector<2x9x16xf32>
    %7 = tpu.concatenate %5, %4, %5 in 1 : vector<2x1x112xf32>, vector<2x7x112xf32>, vector<2x1x112xf32> -> vector<2x9x112xf32>
    %8 = tpu.concatenate %6, %7, %6 in 2 : vector<2x9x16xf32>, vector<2x9x112xf32>, vector<2x9x16xf32> -> vector<2x9x144xf32>
    %cst_11 = arith.constant 0.000000e+00 : f32
    %9 = vector.broadcast %cst_11 : f32 to vector<2x7x112xf32>
    %10 = vector.extract_strided_slice %8 {offsets = [0, 0, 0], sizes = [2, 7, 112], strides = [1, 1, 1]} : vector<2x9x144xf32> to vector<2x7x112xf32>
    %11 = vector.extract_strided_slice %0 {offsets = [0, 0], sizes = [1, 112], strides = [1, 1]} : vector<9x112xf32> to vector<1x112xf32>
    %12 = vector.shape_cast %11 : vector<1x112xf32> to vector<1x1x112xf32>
    %13 = vector.broadcast %12 : vector<1x1x112xf32> to vector<2x7x112xf32>
    %14 = arith.mulf %10, %13 : vector<2x7x112xf32>
    %15 = arith.addf %9, %14 : vector<2x7x112xf32>
    %16 = vector.extract_strided_slice %8 {offsets = [0, 0, 16], sizes = [2, 7, 112], strides = [1, 1, 1]} : vector<2x9x144xf32> to vector<2x7x112xf32>
    %17 = vector.extract_strided_slice %0 {offsets = [1, 0], sizes = [1, 112], strides = [1, 1]} : vector<9x112xf32> to vector<1x112xf32>
    %18 = vector.shape_cast %17 : vector<1x112xf32> to vector<1x1x112xf32>
    %19 = vector.broadcast %18 : vector<1x1x112xf32> to vector<2x7x112xf32>
    %20 = arith.mulf %16, %19 : vector<2x7x112xf32>
    %21 = arith.addf %15, %20 : vector<2x7x112xf32>
    %22 = vector.extract_strided_slice %8 {offsets = [0, 0, 32], sizes = [2, 7, 112], strides = [1, 1, 1]} : vector<2x9x144xf32> to vector<2x7x112xf32>
    %23 = vector.extract_strided_slice %0 {offsets = [2, 0], sizes = [1, 112], strides = [1, 1]} : vector<9x112xf32> to vector<1x112xf32>
    %24 = vector.shape_cast %23 : vector<1x112xf32> to vector<1x1x112xf32>
    %25 = vector.broadcast %24 : vector<1x1x112xf32> to vector<2x7x112xf32>
    %26 = arith.mulf %22, %25 : vector<2x7x112xf32>
    %27 = arith.addf %21, %26 : vector<2x7x112xf32>
    %28 = vector.extract_strided_slice %8 {offsets = [0, 1, 0], sizes = [2, 7, 112], strides = [1, 1, 1]} : vector<2x9x144xf32> to vector<2x7x112xf32>
    %29 = vector.extract_strided_slice %0 {offsets = [3, 0], sizes = [1, 112], strides = [1, 1]} : vector<9x112xf32> to vector<1x112xf32>
    %30 = vector.shape_cast %29 : vector<1x112xf32> to vector<1x1x112xf32>
    %31 = vector.broadcast %30 : vector<1x1x112xf32> to vector<2x7x112xf32>
    %32 = arith.mulf %28, %31 : vector<2x7x112xf32>
    %33 = arith.addf %27, %32 : vector<2x7x112xf32>
    %34 = vector.extract_strided_slice %8 {offsets = [0, 1, 16], sizes = [2, 7, 112], strides = [1, 1, 1]} : vector<2x9x144xf32> to vector<2x7x112xf32>
    %35 = vector.extract_strided_slice %0 {offsets = [4, 0], sizes = [1, 112], strides = [1, 1]} : vector<9x112xf32> to vector<1x112xf32>
    %36 = vector.shape_cast %35 : vector<1x112xf32> to vector<1x1x112xf32>
    %37 = vector.broadcast %36 : vector<1x1x112xf32> to vector<2x7x112xf32>
    %38 = arith.mulf %34, %37 : vector<2x7x112xf32>
    %39 = arith.addf %33, %38 : vector<2x7x112xf32>
    %40 = vector.extract_strided_slice %8 {offsets = [0, 1, 32], sizes = [2, 7, 112], strides = [1, 1, 1]} : vector<2x9x144xf32> to vector<2x7x112xf32>
    %41 = vector.extract_strided_slice %0 {offsets = [5, 0], sizes = [1, 112], strides = [1, 1]} : vector<9x112xf32> to vector<1x112xf32>
    %42 = vector.shape_cast %41 : vector<1x112xf32> to vector<1x1x112xf32>
    %43 = vector.broadcast %42 : vector<1x1x112xf32> to vector<2x7x112xf32>
    %44 = arith.mulf %40, %43 : vector<2x7x112xf32>
    %45 = arith.addf %39, %44 : vector<2x7x112xf32>
    %46 = vector.extract_strided_slice %8 {offsets = [0, 2, 0], sizes = [2, 7, 112], strides = [1, 1, 1]} : vector<2x9x144xf32> to vector<2x7x112xf32>
    %47 = vector.extract_strided_slice %0 {offsets = [6, 0], sizes = [1, 112], strides = [1, 1]} : vector<9x112xf32> to vector<1x112xf32>
    %48 = vector.shape_cast %47 : vector<1x112xf32> to vector<1x1x112xf32>
    %49 = vector.broadcast %48 : vector<1x1x112xf32> to vector<2x7x112xf32>
    %50 = arith.mulf %46, %49 : vector<2x7x112xf32>
    %51 = arith.addf %45, %50 : vector<2x7x112xf32>
    %52 = vector.extract_strided_slice %8 {offsets = [0, 2, 16], sizes = [2, 7, 112], strides = [1, 1, 1]} : vector<2x9x144xf32> to vector<2x7x112xf32>
    %53 = vector.extract_strided_slice %0 {offsets = [7, 0], sizes = [1, 112], strides = [1, 1]} : vector<9x112xf32> to vector<1x112xf32>
    %54 = vector.shape_cast %53 : vector<1x112xf32> to vector<1x1x112xf32>
    %55 = vector.broadcast %54 : vector<1x1x112xf32> to vector<2x7x112xf32>
    %56 = arith.mulf %52, %55 : vector<2x7x112xf32>
    %57 = arith.addf %51, %56 : vector<2x7x112xf32>
    %58 = vector.extract_strided_slice %8 {offsets = [0, 2, 32], sizes = [2, 7, 112], strides = [1, 1, 1]} : vector<2x9x144xf32> to vector<2x7x112xf32>
    %59 = vector.extract_strided_slice %0 {offsets = [8, 0], sizes = [1, 112], strides = [1, 1]} : vector<9x112xf32> to vector<1x112xf32>
    %60 = vector.shape_cast %59 : vector<1x112xf32> to vector<1x1x112xf32>
    %61 = vector.broadcast %60 : vector<1x1x112xf32> to vector<2x7x112xf32>
    %62 = arith.mulf %58, %61 : vector<2x7x112xf32>
    %63 = arith.addf %57, %62 : vector<2x7x112xf32>
    %64 = vector.shape_cast %1 : vector<1x112xf32> to vector<1x1x112xf32>
    %65 = vector.broadcast %64 : vector<1x1x112xf32> to vector<2x7x112xf32>
    %66 = arith.addf %63, %65 : vector<2x7x112xf32>
    %cst_12 = arith.constant 0.000000e+00 : f32
    %67 = vector.broadcast %cst_12 : f32 to vector<2x7x112xf32>
    %68 = arith.maximumf %66, %67 : vector<2x7x112xf32>
    %69 = vector.extract_strided_slice %68 {offsets = [0, 0, 0], sizes = [2, 7, 16], strides = [1, 1, 1]} : vector<2x7x112xf32> to vector<2x7x16xf32>
    %70 = vector.extract_strided_slice %68 {offsets = [0, 0, 16], sizes = [2, 7, 16], strides = [1, 1, 1]} : vector<2x7x112xf32> to vector<2x7x16xf32>
    %71 = arith.addf %69, %70 : vector<2x7x16xf32>
    %72 = vector.extract_strided_slice %68 {offsets = [0, 0, 32], sizes = [2, 7, 16], strides = [1, 1, 1]} : vector<2x7x112xf32> to vector<2x7x16xf32>
    %73 = arith.addf %71, %72 : vector<2x7x16xf32>
    %74 = vector.extract_strided_slice %68 {offsets = [0, 0, 48], sizes = [2, 7, 16], strides = [1, 1, 1]} : vector<2x7x112xf32> to vector<2x7x16xf32>
    %75 = arith.addf %73, %74 : vector<2x7x16xf32>
    %76 = vector.extract_strided_slice %68 {offsets = [0, 0, 64], sizes = [2, 7, 16], strides = [1, 1, 1]} : vector<2x7x112xf32> to vector<2x7x16xf32>
    %77 = arith.addf %75, %76 : vector<2x7x16xf32>
    %78 = vector.extract_strided_slice %68 {offsets = [0, 0, 80], sizes = [2, 7, 16], strides = [1, 1, 1]} : vector<2x7x112xf32> to vector<2x7x16xf32>
    %79 = arith.addf %77, %78 : vector<2x7x16xf32>
    %80 = vector.extract_strided_slice %68 {offsets = [0, 0, 96], sizes = [2, 7, 16], strides = [1, 1, 1]} : vector<2x7x112xf32> to vector<2x7x16xf32>
    %81 = arith.addf %79, %80 : vector<2x7x16xf32>
    %cst_13 = arith.constant dense<0.000000e+00> : vector<2x16xf32>
    %82 = vector.multi_reduction <add>, %81, %cst_13 [1] : vector<2x7x16xf32> to vector<2x16xf32>
    %cst_14 = arith.constant 0.0204081628 : f32
    %83 = vector.broadcast %cst_14 : f32 to vector<2x16xf32>
    %84 = arith.mulf %82, %83 : vector<2x16xf32>
    %85 = vector.shape_cast %68 : vector<2x7x112xf32> to vector<14x112xf32>
    %86 = arith.truncf %85 : vector<14x112xf32> to vector<14x112xbf16>
    %cst_15 = arith.constant dense<0.000000e+00> : vector<14x112xf32>
    %87 = tpu.matmul %86, %2, %cst_15 {dimension_numbers = #tpu.dot_dimension_numbers<[1], [0], [0], [1], [0, 0, 1, 1], [], []>} : vector<14x112xbf16>, vector<112x112xbf16>, vector<14x112xf32> -> vector<14x112xf32>
    %88 = vector.shape_cast %87 : vector<14x112xf32> to vector<2x7x112xf32>
    %89 = vector.shape_cast %3 : vector<1x112xf32> to vector<1x1x112xf32>
    %90 = vector.broadcast %89 : vector<1x1x112xf32> to vector<2x7x112xf32>
    %91 = arith.addf %88, %90 : vector<2x7x112xf32>
    %c0_16 = arith.constant 0 : index
    %c0_17 = arith.constant 0 : index
    %c0_18 = arith.constant 0 : index
    %92 = vector.load %arg1[%c0_16, %c0_17, %c0_18] : memref<2x7x112xf32, #tpu.memory_space<vmem>>, vector<2x7x112xf32>
    %cst_19 = arith.constant 0.000000e+00 : f32
    %93 = vector.broadcast %cst_19 : f32 to vector<2x1x112xf32>
    %cst_20 = arith.constant 0.000000e+00 : f32
    %94 = vector.broadcast %cst_20 : f32 to vector<2x9x16xf32>
    %95 = tpu.concatenate %93, %92, %93 in 1 : vector<2x1x112xf32>, vector<2x7x112xf32>, vector<2x1x112xf32> -> vector<2x9x112xf32>
    %96 = tpu.concatenate %94, %95, %94 in 2 : vector<2x9x16xf32>, vector<2x9x112xf32>, vector<2x9x16xf32> -> vector<2x9x144xf32>
    %cst_21 = arith.constant 0.000000e+00 : f32
    %97 = vector.broadcast %cst_21 : f32 to vector<2x7x112xf32>
    %98 = vector.extract_strided_slice %96 {offsets = [0, 0, 0], sizes = [2, 7, 112], strides = [1, 1, 1]} : vector<2x9x144xf32> to vector<2x7x112xf32>
    %99 = vector.extract_strided_slice %0 {offsets = [0, 0], sizes = [1, 112], strides = [1, 1]} : vector<9x112xf32> to vector<1x112xf32>
    %100 = vector.shape_cast %99 : vector<1x112xf32> to vector<1x1x112xf32>
    %101 = vector.broadcast %100 : vector<1x1x112xf32> to vector<2x7x112xf32>
    %102 = arith.mulf %98, %101 : vector<2x7x112xf32>
    %103 = arith.addf %97, %102 : vector<2x7x112xf32>
    %104 = vector.extract_strided_slice %96 {offsets = [0, 0, 16], sizes = [2, 7, 112], strides = [1, 1, 1]} : vector<2x9x144xf32> to vector<2x7x112xf32>
    %105 = vector.extract_strided_slice %0 {offsets = [1, 0], sizes = [1, 112], strides = [1, 1]} : vector<9x112xf32> to vector<1x112xf32>
    %106 = vector.shape_cast %105 : vector<1x112xf32> to vector<1x1x112xf32>
    %107 = vector.broadcast %106 : vector<1x1x112xf32> to vector<2x7x112xf32>
    %108 = arith.mulf %104, %107 : vector<2x7x112xf32>
    %109 = arith.addf %103, %108 : vector<2x7x112xf32>
    %110 = vector.extract_strided_slice %96 {offsets = [0, 0, 32], sizes = [2, 7, 112], strides = [1, 1, 1]} : vector<2x9x144xf32> to vector<2x7x112xf32>
    %111 = vector.extract_strided_slice %0 {offsets = [2, 0], sizes = [1, 112], strides = [1, 1]} : vector<9x112xf32> to vector<1x112xf32>
    %112 = vector.shape_cast %111 : vector<1x112xf32> to vector<1x1x112xf32>
    %113 = vector.broadcast %112 : vector<1x1x112xf32> to vector<2x7x112xf32>
    %114 = arith.mulf %110, %113 : vector<2x7x112xf32>
    %115 = arith.addf %109, %114 : vector<2x7x112xf32>
    %116 = vector.extract_strided_slice %96 {offsets = [0, 1, 0], sizes = [2, 7, 112], strides = [1, 1, 1]} : vector<2x9x144xf32> to vector<2x7x112xf32>
    %117 = vector.extract_strided_slice %0 {offsets = [3, 0], sizes = [1, 112], strides = [1, 1]} : vector<9x112xf32> to vector<1x112xf32>
    %118 = vector.shape_cast %117 : vector<1x112xf32> to vector<1x1x112xf32>
    %119 = vector.broadcast %118 : vector<1x1x112xf32> to vector<2x7x112xf32>
    %120 = arith.mulf %116, %119 : vector<2x7x112xf32>
    %121 = arith.addf %115, %120 : vector<2x7x112xf32>
    %122 = vector.extract_strided_slice %96 {offsets = [0, 1, 16], sizes = [2, 7, 112], strides = [1, 1, 1]} : vector<2x9x144xf32> to vector<2x7x112xf32>
    %123 = vector.extract_strided_slice %0 {offsets = [4, 0], sizes = [1, 112], strides = [1, 1]} : vector<9x112xf32> to vector<1x112xf32>
    %124 = vector.shape_cast %123 : vector<1x112xf32> to vector<1x1x112xf32>
    %125 = vector.broadcast %124 : vector<1x1x112xf32> to vector<2x7x112xf32>
    %126 = arith.mulf %122, %125 : vector<2x7x112xf32>
    %127 = arith.addf %121, %126 : vector<2x7x112xf32>
    %128 = vector.extract_strided_slice %96 {offsets = [0, 1, 32], sizes = [2, 7, 112], strides = [1, 1, 1]} : vector<2x9x144xf32> to vector<2x7x112xf32>
    %129 = vector.extract_strided_slice %0 {offsets = [5, 0], sizes = [1, 112], strides = [1, 1]} : vector<9x112xf32> to vector<1x112xf32>
    %130 = vector.shape_cast %129 : vector<1x112xf32> to vector<1x1x112xf32>
    %131 = vector.broadcast %130 : vector<1x1x112xf32> to vector<2x7x112xf32>
    %132 = arith.mulf %128, %131 : vector<2x7x112xf32>
    %133 = arith.addf %127, %132 : vector<2x7x112xf32>
    %134 = vector.extract_strided_slice %96 {offsets = [0, 2, 0], sizes = [2, 7, 112], strides = [1, 1, 1]} : vector<2x9x144xf32> to vector<2x7x112xf32>
    %135 = vector.extract_strided_slice %0 {offsets = [6, 0], sizes = [1, 112], strides = [1, 1]} : vector<9x112xf32> to vector<1x112xf32>
    %136 = vector.shape_cast %135 : vector<1x112xf32> to vector<1x1x112xf32>
    %137 = vector.broadcast %136 : vector<1x1x112xf32> to vector<2x7x112xf32>
    %138 = arith.mulf %134, %137 : vector<2x7x112xf32>
    %139 = arith.addf %133, %138 : vector<2x7x112xf32>
    %140 = vector.extract_strided_slice %96 {offsets = [0, 2, 16], sizes = [2, 7, 112], strides = [1, 1, 1]} : vector<2x9x144xf32> to vector<2x7x112xf32>
    %141 = vector.extract_strided_slice %0 {offsets = [7, 0], sizes = [1, 112], strides = [1, 1]} : vector<9x112xf32> to vector<1x112xf32>
    %142 = vector.shape_cast %141 : vector<1x112xf32> to vector<1x1x112xf32>
    %143 = vector.broadcast %142 : vector<1x1x112xf32> to vector<2x7x112xf32>
    %144 = arith.mulf %140, %143 : vector<2x7x112xf32>
    %145 = arith.addf %139, %144 : vector<2x7x112xf32>
    %146 = vector.extract_strided_slice %96 {offsets = [0, 2, 32], sizes = [2, 7, 112], strides = [1, 1, 1]} : vector<2x9x144xf32> to vector<2x7x112xf32>
    %147 = vector.extract_strided_slice %0 {offsets = [8, 0], sizes = [1, 112], strides = [1, 1]} : vector<9x112xf32> to vector<1x112xf32>
    %148 = vector.shape_cast %147 : vector<1x112xf32> to vector<1x1x112xf32>
    %149 = vector.broadcast %148 : vector<1x1x112xf32> to vector<2x7x112xf32>
    %150 = arith.mulf %146, %149 : vector<2x7x112xf32>
    %151 = arith.addf %145, %150 : vector<2x7x112xf32>
    %152 = vector.shape_cast %1 : vector<1x112xf32> to vector<1x1x112xf32>
    %153 = vector.broadcast %152 : vector<1x1x112xf32> to vector<2x7x112xf32>
    %154 = arith.addf %151, %153 : vector<2x7x112xf32>
    %cst_22 = arith.constant 0.000000e+00 : f32
    %155 = vector.broadcast %cst_22 : f32 to vector<2x7x112xf32>
    %156 = arith.maximumf %154, %155 : vector<2x7x112xf32>
    %157 = vector.extract_strided_slice %156 {offsets = [0, 0, 0], sizes = [2, 7, 16], strides = [1, 1, 1]} : vector<2x7x112xf32> to vector<2x7x16xf32>
    %158 = vector.extract_strided_slice %156 {offsets = [0, 0, 16], sizes = [2, 7, 16], strides = [1, 1, 1]} : vector<2x7x112xf32> to vector<2x7x16xf32>
    %159 = arith.addf %157, %158 : vector<2x7x16xf32>
    %160 = vector.extract_strided_slice %156 {offsets = [0, 0, 32], sizes = [2, 7, 16], strides = [1, 1, 1]} : vector<2x7x112xf32> to vector<2x7x16xf32>
    %161 = arith.addf %159, %160 : vector<2x7x16xf32>
    %162 = vector.extract_strided_slice %156 {offsets = [0, 0, 48], sizes = [2, 7, 16], strides = [1, 1, 1]} : vector<2x7x112xf32> to vector<2x7x16xf32>
    %163 = arith.addf %161, %162 : vector<2x7x16xf32>
    %164 = vector.extract_strided_slice %156 {offsets = [0, 0, 64], sizes = [2, 7, 16], strides = [1, 1, 1]} : vector<2x7x112xf32> to vector<2x7x16xf32>
    %165 = arith.addf %163, %164 : vector<2x7x16xf32>
    %166 = vector.extract_strided_slice %156 {offsets = [0, 0, 80], sizes = [2, 7, 16], strides = [1, 1, 1]} : vector<2x7x112xf32> to vector<2x7x16xf32>
    %167 = arith.addf %165, %166 : vector<2x7x16xf32>
    %168 = vector.extract_strided_slice %156 {offsets = [0, 0, 96], sizes = [2, 7, 16], strides = [1, 1, 1]} : vector<2x7x112xf32> to vector<2x7x16xf32>
    %169 = arith.addf %167, %168 : vector<2x7x16xf32>
    %cst_23 = arith.constant dense<0.000000e+00> : vector<2x16xf32>
    %170 = vector.multi_reduction <add>, %169, %cst_23 [1] : vector<2x7x16xf32> to vector<2x16xf32>
    %cst_24 = arith.constant 0.0204081628 : f32
    %171 = vector.broadcast %cst_24 : f32 to vector<2x16xf32>
    %172 = arith.mulf %170, %171 : vector<2x16xf32>
    %173 = vector.shape_cast %156 : vector<2x7x112xf32> to vector<14x112xf32>
    %174 = arith.truncf %173 : vector<14x112xf32> to vector<14x112xbf16>
    %cst_25 = arith.constant dense<0.000000e+00> : vector<14x112xf32>
    %175 = tpu.matmul %174, %2, %cst_25 {dimension_numbers = #tpu.dot_dimension_numbers<[1], [0], [0], [1], [0, 0, 1, 1], [], []>} : vector<14x112xbf16>, vector<112x112xbf16>, vector<14x112xf32> -> vector<14x112xf32>
    %176 = vector.shape_cast %175 : vector<14x112xf32> to vector<2x7x112xf32>
    %177 = vector.shape_cast %3 : vector<1x112xf32> to vector<1x1x112xf32>
    %178 = vector.broadcast %177 : vector<1x1x112xf32> to vector<2x7x112xf32>
    %179 = arith.addf %176, %178 : vector<2x7x112xf32>
    %180 = arith.subf %91, %179 : vector<2x7x112xf32>
    %181 = math.absf %180 : vector<2x7x112xf32>
    %c0_26 = arith.constant 0 : index
    %c0_27 = arith.constant 0 : index
    %182 = vector.load %arg6[%c0_26, %c0_27] : memref<2x16xf32, #tpu.memory_space<vmem>>, vector<2x16xf32>
    tpu.vector_store %arg6[%c0_26, %c0_27], %84 {strides = array<i32>} : memref<2x16xf32, #tpu.memory_space<vmem>>, vector<2x16xf32>,
    %c0_28 = arith.constant 0 : index
    %c0_29 = arith.constant 0 : index
    %183 = vector.load %arg7[%c0_28, %c0_29] : memref<2x16xf32, #tpu.memory_space<vmem>>, vector<2x16xf32>
    tpu.vector_store %arg7[%c0_28, %c0_29], %172 {strides = array<i32>} : memref<2x16xf32, #tpu.memory_space<vmem>>, vector<2x16xf32>,
    %184 = arith.mulf %68, %181 : vector<2x7x112xf32>
    %185 = vector.extract_strided_slice %184 {offsets = [0, 0, 0], sizes = [2, 7, 16], strides = [1, 1, 1]} : vector<2x7x112xf32> to vector<2x7x16xf32>
    %186 = vector.extract_strided_slice %184 {offsets = [0, 0, 16], sizes = [2, 7, 16], strides = [1, 1, 1]} : vector<2x7x112xf32> to vector<2x7x16xf32>
    %187 = arith.addf %185, %186 : vector<2x7x16xf32>
    %188 = vector.extract_strided_slice %184 {offsets = [0, 0, 32], sizes = [2, 7, 16], strides = [1, 1, 1]} : vector<2x7x112xf32> to vector<2x7x16xf32>
    %189 = arith.addf %187, %188 : vector<2x7x16xf32>
    %190 = vector.extract_strided_slice %184 {offsets = [0, 0, 48], sizes = [2, 7, 16], strides = [1, 1, 1]} : vector<2x7x112xf32> to vector<2x7x16xf32>
    %191 = arith.addf %189, %190 : vector<2x7x16xf32>
    %192 = vector.extract_strided_slice %184 {offsets = [0, 0, 64], sizes = [2, 7, 16], strides = [1, 1, 1]} : vector<2x7x112xf32> to vector<2x7x16xf32>
    %193 = arith.addf %191, %192 : vector<2x7x16xf32>
    %194 = vector.extract_strided_slice %184 {offsets = [0, 0, 80], sizes = [2, 7, 16], strides = [1, 1, 1]} : vector<2x7x112xf32> to vector<2x7x16xf32>
    %195 = arith.addf %193, %194 : vector<2x7x16xf32>
    %196 = vector.extract_strided_slice %184 {offsets = [0, 0, 96], sizes = [2, 7, 16], strides = [1, 1, 1]} : vector<2x7x112xf32> to vector<2x7x16xf32>
    %197 = arith.addf %195, %196 : vector<2x7x16xf32>
    %cst_30 = arith.constant dense<0.000000e+00> : vector<2x16xf32>
    %198 = vector.multi_reduction <add>, %197, %cst_30 [1] : vector<2x7x16xf32> to vector<2x16xf32>
    %cst_31 = arith.constant 0.0204081628 : f32
    %199 = vector.broadcast %cst_31 : f32 to vector<2x16xf32>
    %200 = arith.mulf %198, %199 : vector<2x16xf32>
    %c0_32 = arith.constant 0 : index
    %c0_33 = arith.constant 0 : index
    %201 = vector.load %arg8[%c0_32, %c0_33] : memref<2x16xf32, #tpu.memory_space<vmem>>, vector<2x16xf32>
    tpu.vector_store %arg8[%c0_32, %c0_33], %200 {strides = array<i32>} : memref<2x16xf32, #tpu.memory_space<vmem>>, vector<2x16xf32>,
    %202 = arith.mulf %156, %181 : vector<2x7x112xf32>
    %203 = vector.extract_strided_slice %202 {offsets = [0, 0, 0], sizes = [2, 7, 16], strides = [1, 1, 1]} : vector<2x7x112xf32> to vector<2x7x16xf32>
    %204 = vector.extract_strided_slice %202 {offsets = [0, 0, 16], sizes = [2, 7, 16], strides = [1, 1, 1]} : vector<2x7x112xf32> to vector<2x7x16xf32>
    %205 = arith.addf %203, %204 : vector<2x7x16xf32>
    %206 = vector.extract_strided_slice %202 {offsets = [0, 0, 32], sizes = [2, 7, 16], strides = [1, 1, 1]} : vector<2x7x112xf32> to vector<2x7x16xf32>
    %207 = arith.addf %205, %206 : vector<2x7x16xf32>
    %208 = vector.extract_strided_slice %202 {offsets = [0, 0, 48], sizes = [2, 7, 16], strides = [1, 1, 1]} : vector<2x7x112xf32> to vector<2x7x16xf32>
    %209 = arith.addf %207, %208 : vector<2x7x16xf32>
    %210 = vector.extract_strided_slice %202 {offsets = [0, 0, 64], sizes = [2, 7, 16], strides = [1, 1, 1]} : vector<2x7x112xf32> to vector<2x7x16xf32>
    %211 = arith.addf %209, %210 : vector<2x7x16xf32>
    %212 = vector.extract_strided_slice %202 {offsets = [0, 0, 80], sizes = [2, 7, 16], strides = [1, 1, 1]} : vector<2x7x112xf32> to vector<2x7x16xf32>
    %213 = arith.addf %211, %212 : vector<2x7x16xf32>
    %214 = vector.extract_strided_slice %202 {offsets = [0, 0, 96], sizes = [2, 7, 16], strides = [1, 1, 1]} : vector<2x7x112xf32> to vector<2x7x16xf32>
    %215 = arith.addf %213, %214 : vector<2x7x16xf32>
    %cst_34 = arith.constant dense<0.000000e+00> : vector<2x16xf32>
    %216 = vector.multi_reduction <add>, %215, %cst_34 [1] : vector<2x7x16xf32> to vector<2x16xf32>
    %cst_35 = arith.constant 0.0204081628 : f32
    %217 = vector.broadcast %cst_35 : f32 to vector<2x16xf32>
    %218 = arith.mulf %216, %217 : vector<2x16xf32>
    %c0_36 = arith.constant 0 : index
    %c0_37 = arith.constant 0 : index
    %219 = vector.load %arg9[%c0_36, %c0_37] : memref<2x16xf32, #tpu.memory_space<vmem>>, vector<2x16xf32>
    tpu.vector_store %arg9[%c0_36, %c0_37], %218 {strides = array<i32>} : memref<2x16xf32, #tpu.memory_space<vmem>>, vector<2x16xf32>,
    return
  }
}

</mosaic_0001>

<llo_original>
// kernel: tile.19
$region0: #{tile.19}
  %s0 = inlined_call_operand.vmem [shape: f32[9,7,16], index: 0, kind: input, shape index: {}]
  %s1 = inlined_call_operand.vmem [shape: f32[9,112], index: 1, kind: output, shape index: {}]
  %v2 = vld [vmem:[%s0] ss:$8 sm:$0xf]
  %v3 = vld [vmem:[%s0] ss:$8 sm:$0xf0]
  %vm4 = vcmask 1047556
  %v5 = vsel %vm4, %v3, %v2
  %vm6 = vcmask 130048
  %7 = vst.msk [vmem:[%s1] sm:$0xff] %vm6, %v5
  %s8 = scalar_lea.vmem %s0, 64
  %v9 = vld [vmem:[%s8] sm:$0x1]
  %vm10 = vcmask 130048
  %s11 = scalar_lea.vmem %s1, 8
  %12 = vst.msk [vmem:[%s11] sm:$0x1] %vm10, %v9
  %s13 = scalar_lea.vmem %s0, 6
  %v14 = vld [vmem:[%s13] ss:$8 sm:$0xf]
  %s15 = scalar_lea.vmem %s0, 6
  %v16 = vld [vmem:[%s15] ss:$8 sm:$0xf0]
  %vm17 = vcmask 1047556
  %v18 = vsel %vm17, %v16, %v14
  %19 = vrot.lane.b32.xlu0 %v18, 96
  %v20 = vpop.permute.xlu0 %19
  %vm21 = vcmask 917248
  %22 = vst.msk [vmem:[%s1] sm:$0xff] %vm21, %v20
  %s23 = scalar_lea.vmem %s0, 70
  %v24 = vld [vmem:[%s23] sm:$0x1]
  %25 = vrot.lane.b32.xlu0 %v24, 96
  %v26 = vpop.permute.xlu0 %25
  %vm27 = vcmask 917248
  %s28 = scalar_lea.vmem %s1, 8
  %29 = vst.msk [vmem:[%s28] sm:$0x1] %vm27, %v26
  %s30 = scalar_lea.vmem %s0, 5
  %v31 = vld [vmem:[%s30] ss:$8 sm:$0xf]
  %s32 = scalar_lea.vmem %s0, 5
  %v33 = vld [vmem:[%s32] ss:$8 sm:$0xf0]
  %vm34 = vcmask 1047556
  %v35 = vsel %vm34, %v33, %v31
  %36 = vrot.lane.b32.xlu0 %v35, 80
  %v37 = vpop.permute.xlu0 %36
  %vm38 = vcmask 786048
  %39 = vst.msk [vmem:[%s1] sm:$0xff] %vm38, %v37
  %s40 = scalar_lea.vmem %s0, 69
  %v41 = vld [vmem:[%s40] sm:$0x1]
  %42 = vrot.lane.b32.xlu0 %v41, 80
  %v43 = vpop.permute.xlu0 %42
  %vm44 = vcmask 786048
  %s45 = scalar_lea.vmem %s1, 8
  %46 = vst.msk [vmem:[%s45] sm:$0x1] %vm44, %v43
  %s47 = scalar_lea.vmem %s0, 4
  %v48 = vld [vmem:[%s47] ss:$8 sm:$0xf]
  %s49 = scalar_lea.vmem %s0, 4
  %v50 = vld [vmem:[%s49] ss:$8 sm:$0xf0]
  %vm51 = vcmask 1047556
  %v52 = vsel %vm51, %v50, %v48
  %53 = vrot.lane.b32.xlu0 %v52, 64
  %v54 = vpop.permute.xlu0 %53
  %vm55 = vcmask 654848
  %56 = vst.msk [vmem:[%s1] sm:$0xff] %vm55, %v54
  %s57 = scalar_lea.vmem %s0, 68
  %v58 = vld [vmem:[%s57] sm:$0x1]
  %59 = vrot.lane.b32.xlu0 %v58, 64
  %v60 = vpop.permute.xlu0 %59
  %vm61 = vcmask 654848
  %s62 = scalar_lea.vmem %s1, 8
  %63 = vst.msk [vmem:[%s62] sm:$0x1] %vm61, %v60
  %s64 = scalar_lea.vmem %s0, 3
  %v65 = vld [vmem:[%s64] ss:$8 sm:$0xf]
  %s66 = scalar_lea.vmem %s0, 3
  %v67 = vld [vmem:[%s66] ss:$8 sm:$0xf0]
  %vm68 = vcmask 1047556
  %v69 = vsel %vm68, %v67, %v65
  %70 = vrot.lane.b32.xlu0 %v69, 48
  %v71 = vpop.permute.xlu0 %70
  %vm72 = vcmask 523648
  %73 = vst.msk [vmem:[%s1] sm:$0xff] %vm72, %v71
  %s74 = scalar_lea.vmem %s0, 67
  %v75 = vld [vmem:[%s74] sm:$0x1]
  %76 = vrot.lane.b32.xlu0 %v75, 48
  %v77 = vpop.permute.xlu0 %76
  %vm78 = vcmask 523648
  %s79 = scalar_lea.vmem %s1, 8
  %80 = vst.msk [vmem:[%s79] sm:$0x1] %vm78, %v77
  %s81 = scalar_lea.vmem %s0, 2
  %v82 = vld [vmem:[%s81] ss:$8 sm:$0xf]
  %s83 = scalar_lea.vmem %s0, 2
  %v84 = vld [vmem:[%s83] ss:$8 sm:$0xf0]
  %vm85 = vcmask 1047556
  %v86 = vsel %vm85, %v84, %v82
  %87 = vrot.lane.b32.xlu0 %v86, 32
  %v88 = vpop.permute.xlu0 %87
  %vm89 = vcmask 392448
  %90 = vst.msk [vmem:[%s1] sm:$0xff] %vm89, %v88
  %s91 = scalar_lea.vmem %s0, 66
  %v92 = vld [vmem:[%s91] sm:$0x1]
  %93 = vrot.lane.b32.xlu0 %v92, 32
  %v94 = vpop.permute.xlu0 %93
  %vm95 = vcmask 392448
  %s96 = scalar_lea.vmem %s1, 8
  %97 = vst.msk [vmem:[%s96] sm:$0x1] %vm95, %v94
  %s98 = scalar_lea.vmem %s0, 1
  %v99 = vld [vmem:[%s98] ss:$8 sm:$0xf]
  %s100 = scalar_lea.vmem %s0, 1
  %v101 = vld [vmem:[%s100] ss:$8 sm:$0xf0]
  %vm102 = vcmask 1047556
  %v103 = vsel %vm102, %v101, %v99
  %104 = vrot.lane.b32.xlu0 %v103, 16
  %v105 = vpop.permute.xlu0 %104
  %vm106 = vcmask 261248
  %107 = vst.msk [vmem:[%s1] sm:$0xff] %vm106, %v105
  %s108 = scalar_lea.vmem %s0, 65
  %v109 = vld [vmem:[%s108] sm:$0x1]
  %110 = vrot.lane.b32.xlu0 %v109, 16
  %v111 = vpop.permute.xlu0 %110
  %vm112 = vcmask 261248
  %s113 = scalar_lea.vmem %s1, 8
  %114 = vst.msk [vmem:[%s113] sm:$0x1] %vm112, %v111

// kernel: doublenet_forward.1
$region0: #{doublenet_forward.1}
  #allocation0 [shape = 'u32[]', space=smem, size = 0x4, offset = 0x4, fixed_abs, tag = 'smem constant byte address 0x4 - core index']
  #allocation1 [shape = 'u32[144,128]{1,0:T(1,128)}', space=vmem, size = 0x12000, scoped, tag = 'internal scratch']
  %s0 = inlined_call_operand.vmem [shape: f32[2,7,112], index: 0, kind: input, shape index: {}]
  %s1 = inlined_call_operand.vmem [shape: f32[2,7,112], index: 1, kind: input, shape index: {}]
  %s2 = inlined_call_operand.vmem [shape: f32[9,112], index: 2, kind: input, shape index: {}]
  %s3 = inlined_call_operand.vmem [shape: f32[1,112], index: 3, kind: input, shape index: {}]
  %s4 = inlined_call_operand.vmem [shape: bf16[112,112], index: 4, kind: input, shape index: {}]
  %s5 = inlined_call_operand.vmem [shape: f32[1,112], index: 5, kind: input, shape index: {}]
  %s6 = inlined_call_operand.hbm [shape: f32[2,16], index: 6, kind: output, shape index: {0}]
  %s7 = inlined_call_operand.hbm [shape: f32[2,16], index: 7, kind: output, shape index: {1}]
  %s8 = inlined_call_operand.hbm [shape: f32[2,16], index: 8, kind: output, shape index: {2}]
  %s9 = inlined_call_operand.hbm [shape: f32[2,16], index: 9, kind: output, shape index: {3}]
  %10 = xla_tuple %s6, %s7, %s8, %s9
  %s11 = sld [smem:[#allocation0]]
  $region58: #{doublenet_forward.1} parent=0
    _
  %s13 = ssub.s32 1, %s11
  %s14 = scalar_select 0, %s13, %s11
  $region1: #{doublenet_forward.1} parent=0
    #allocation2 [shape = 'u8[1024]{0}', space=vmem, size = 0x400, scoped, tag = 'output window, operand 0, single buffered']
    #allocation3 [shape = 's32[1]{0}', space=sflag, size = 0x4, scoped, tag = 'scoped memory for doublenet_forward.1']
    #allocation4 [shape = 'u8[1024]{0}', space=vmem, size = 0x400, scoped, tag = 'output window, operand 1, single buffered']
    #allocation5 [shape = 's32[1]{0}', space=sflag, size = 0x4, scoped, tag = 'scoped memory for doublenet_forward.1']
    #allocation6 [shape = 'u8[1024]{0}', space=vmem, size = 0x400, scoped, tag = 'output window, operand 2, single buffered']
    #allocation7 [shape = 'u8[1024]{0}', space=vmem, size = 0x400, scoped, tag = 'output window, operand 3, single buffered']
    #allocation8 [shape = 's32[1]{0}', space=sflag, size = 0x4, scoped, tag = 'scoped memory for doublenet_forward.1']
    %15 = vsyncpa [#allocation3], 0
    %16 = vsyncpa [#allocation5], 0
    %17 = vsyncpa [#allocation8], 0
    // Predicated region
    $region2: #{doublenet_forward.1} parent=1 // pred_check
      _
    $region3: #{doublenet_forward.1} parent=1 // pred_check_branch
      %19 = sbr.rel (0) target = $region5
    $region4: #{doublenet_forward.1} parent=1 // pred_region
      _
    $region5: #{doublenet_forward.1} parent=1 // pred_fallthru
      _
    // Predicated region
    $region6: #{doublenet_forward.1} parent=1 // pred_check
      _
    $region7: #{doublenet_forward.1} parent=1 // pred_check_branch
      %21 = sbr.rel (0) target = $region9
    $region8: #{doublenet_forward.1} parent=1 // pred_region
      _
    $region9: #{doublenet_forward.1} parent=1 // pred_fallthru
      _
    // Predicated region
    $region10: #{doublenet_forward.1} parent=1 // pred_check
      _
    $region11: #{doublenet_forward.1} parent=1 // pred_check_branch
      %23 = sbr.rel (0) target = $region13
    $region12: #{doublenet_forward.1} parent=1 // pred_region
      _
    $region13: #{doublenet_forward.1} parent=1 // pred_fallthru
      _
    // Predicated region
    $region14: #{doublenet_forward.1} parent=1 // pred_check
      _
    $region15: #{doublenet_forward.1} parent=1 // pred_check_branch
      %25 = sbr.rel (0) target = $region17
    $region16: #{doublenet_forward.1} parent=1 // pred_region
      _
    $region17: #{doublenet_forward.1} parent=1 // pred_fallthru
      _
    // Predicated region
    $region18: #{doublenet_forward.1} parent=1 // pred_check
      _
    $region19: #{doublenet_forward.1} parent=1 // pred_check_branch
      %27 = sbr.rel (0) target = $region21
    $region20: #{doublenet_forward.1} parent=1 // pred_region
      _
    $region21: #{doublenet_forward.1} parent=1 // pred_fallthru
      _
    // Predicated region
    $region22: #{doublenet_forward.1} parent=1 // pred_check
      _
    $region23: #{doublenet_forward.1} parent=1 // pred_check_branch
      %29 = sbr.rel (0) target = $region25
    $region24: #{doublenet_forward.1} parent=1 // pred_region
      _
    $region25: #{doublenet_forward.1} parent=1 // pred_fallthru
      _
    %v31 = vld [vmem:[%s2] sm:$0xff]
    %v32 = vld [vmem:[%s2 + $0x8] sm:$0x1]
    %v33 = vld [vmem:[%s3] sm:$0x1]
    %v34 = vld [vmem:[%s4] sm:$0xf]
    %v35 = vld [vmem:[%s4 + $0x4] sm:$0xf]
    %v36 = vld [vmem:[%s4 + $0x8] sm:$0xf]
    %v37 = vld [vmem:[%s4 + $0xc] sm:$0xf]
    %v38 = vld [vmem:[%s4 + $0x10] sm:$0xf]
    %v39 = vld [vmem:[%s4 + $0x14] sm:$0xf]
    %v40 = vld [vmem:[%s4 + $0x18] sm:$0xf]
    %v41 = vld [vmem:[%s4 + $0x1c] sm:$0xf]
    %v42 = vld [vmem:[%s4 + $0x20] sm:$0xf]
    %v43 = vld [vmem:[%s4 + $0x24] sm:$0xf]
    %v44 = vld [vmem:[%s4 + $0x28] sm:$0xf]
    %v45 = vld [vmem:[%s4 + $0x2c] sm:$0xf]
    %v46 = vld [vmem:[%s4 + $0x30] sm:$0xf]
    %v47 = vld [vmem:[%s4 + $0x34] sm:$0xf]
    %v48 = vld [vmem:[%s5] sm:$0x1]
    %v49 = vld [vmem:[%s0] sm:$0x7f]
    %v50 = vld [vmem:[%s0 + $0x8] sm:$0x7f]
    %v53 = vrot.slane %v49, 7
    %v54 = vrot.slane %v50, 7
    %vm57 = vcmask 1040384
    %v58 = vsel %vm57, 0.0, %v53
    %v59 = vsel %vm57, 0.0, %v54
    %63 = vrot.lane.b32.xlu0 %v58, 16
    %v64 = vpop.permute.xlu0 %63
    %65 = vrot.lane.b32.xlu0 0.0, 16
    %v66 = vpop.permute.xlu0 %65
    %67 = vrot.lane.b32.xlu0 %v59, 16
    %v68 = vpop.permute.xlu0 %67
    %vm72 = vcmask 130048
    %v73 = vsel %vm72, 0.0, %v64
    %v74 = vsel %vm72, 0.0, %v66
    %v75 = vsel %vm72, 0.0, %v68
    %v76 = vlaneseq
    %v77 = vshrl.u32 %v76, 7
    %v78 = vsub.s32 0, %v77
    %v79 = vrot.slane %v31, %v78
    %v80 = vmul.f32 %v73, %v79
    %v81 = vmul.f32 %v75, %v79
    %v82 = vadd.f32 %v80, 0.0
    %v83 = vadd.f32 %v81, 0.0
    %v84 = vlaneseq
    %v85 = vshrl.u32 %v84, 7
    %v86 = vsub.s32 1, %v85
    %v87 = vrot.slane %v31, %v86
    %89 = vrot.lane.b32.xlu0 %v87, 16
    %v90 = vpop.permute.xlu0 %89
    %v92 = vmul.f32 %v73, %v90
    %v93 = vmul.f32 %v75, %v90
    %96 = vrot.lane.b32.xlu0 %v92, 112
    %v97 = vpop.permute.xlu0 %96
    %98 = vrot.lane.b32.xlu0 %v93, 112
    %v99 = vpop.permute.xlu0 %98
    %v102 = vadd.f32 %v82, %v97
    %v103 = vadd.f32 %v83, %v99
    %v104 = vlaneseq
    %v105 = vshrl.u32 %v104, 7
    %v106 = vsub.s32 2, %v105
    %v107 = vrot.slane %v31, %v106
    %109 = vrot.lane.b32.xlu0 %v107, 32
    %v110 = vpop.permute.xlu0 %109
    %v112 = vmul.f32 %v73, %v110
    %v113 = vmul.f32 %v110, 0.0
    %v114 = vmul.f32 %v75, %v110
    %118 = vrot.lane.b32.xlu0 %v112, 96
    %v119 = vpop.permute.xlu0 %118
    %120 = vrot.lane.b32.xlu0 %v113, 96
    %v121 = vpop.permute.xlu0 %120
    %122 = vrot.lane.b32.xlu0 %v114, 96
    %v123 = vpop.permute.xlu0 %122
    %vm124 = vcmask 785408
    %v125 = vsel %vm124, %v119, %v121
    %v126 = vsel %vm124, %v123, %v121
    %v129 = vadd.f32 %v102, %v125
    %v130 = vadd.f32 %v103, %v126
    %v131 = vlaneseq
    %v132 = vshrl.u32 %v131, 7
    %v133 = vsub.s32 3, %v132
    %v134 = vrot.slane %v31, %v133
    %v135 = vmul.f32 %v73, %v134
    %v136 = vmul.f32 %v75, %v134
    %v139 = vrot.slane %v135, 1
    %v140 = vrot.slane %v136, 1
    %v143 = vadd.f32 %v129, %v139
    %v144 = vadd.f32 %v130, %v140
    %v145 = vlaneseq
    %v146 = vshrl.u32 %v145, 7
    %v147 = vsub.s32 4, %v146
    %v148 = vrot.slane %v31, %v147
    %150 = vrot.lane.b32.xlu0 %v148, 16
    %v151 = vpop.permute.xlu0 %150
    %v153 = vmul.f32 %v73, %v151
    %v154 = vmul.f32 %v75, %v151
    %v157 = vrot.slane %v153, 1
    %v158 = vrot.slane %v154, 1
    %159 = vrot.lane.b32.xlu0 %v157, 112
    %v160 = vpop.permute.xlu0 %159
    %161 = vrot.lane.b32.xlu0 %v158, 112
    %v162 = vpop.permute.xlu0 %161
    %v165 = vadd.f32 %v143, %v160
    %v166 = vadd.f32 %v144, %v162
    %v167 = vlaneseq
    %v168 = vshrl.u32 %v167, 7
    %v169 = vsub.s32 5, %v168
    %v170 = vrot.slane %v31, %v169
    %172 = vrot.lane.b32.xlu0 %v170, 32
    %v173 = vpop.permute.xlu0 %172
    %v175 = vmul.f32 %v73, %v173
    %v176 = vmul.f32 %v173, 0.0
    %v177 = vmul.f32 %v75, %v173
    %v181 = vrot.slane %v175, 1
    %v182 = vrot.slane %v176, 1
    %v183 = vrot.slane %v177, 1
    %184 = vrot.lane.b32.xlu0 %v181, 96
    %v185 = vpop.permute.xlu0 %184
    %186 = vrot.lane.b32.xlu0 %v182, 96
    %v187 = vpop.permute.xlu0 %186
    %188 = vrot.lane.b32.xlu0 %v183, 96
    %v189 = vpop.permute.xlu0 %188
    %v190 = vsel %vm124, %v185, %v187
    %v191 = vsel %vm124, %v189, %v187
    %v194 = vadd.f32 %v165, %v190
    %v195 = vadd.f32 %v166, %v191
    %v196 = vlaneseq
    %v197 = vshrl.u32 %v196, 7
    %v198 = vsub.s32 6, %v197
    %v199 = vrot.slane %v31, %v198
    %v200 = vmul.f32 %v73, %v199
    %v201 = vmul.f32 %v74, %v199
    %v202 = vmul.f32 %v75, %v199
    %vm206 = vcmask 1045504
    %v207 = vrot.slane %v200, 2
    %v208 = vrot.slane %v201, 2
    %v209 = vsel %vm206, %v207, %v208
    %v210 = vrot.slane %v202, 2
    %v211 = vsel %vm206, %v210, %v208
    %v214 = vadd.f32 %v194, %v209
    %v215 = vadd.f32 %v195, %v211
    %v216 = vlaneseq
    %v217 = vshrl.u32 %v216, 7
    %v218 = vsub.s32 7, %v217
    %v219 = vrot.slane %v31, %v218
    %221 = vrot.lane.b32.xlu0 %v219, 16
    %v222 = vpop.permute.xlu0 %221
    %v224 = vmul.f32 %v73, %v222
    %v225 = vmul.f32 %v74, %v222
    %v226 = vmul.f32 %v75, %v222
    %v230 = vrot.slane %v224, 2
    %v231 = vrot.slane %v225, 2
    %v232 = vsel %vm206, %v230, %v231
    %v233 = vrot.slane %v226, 2
    %v234 = vsel %vm206, %v233, %v231
    %235 = vrot.lane.b32.xlu0 %v232, 112
    %v236 = vpop.permute.xlu0 %235
    %237 = vrot.lane.b32.xlu0 %v234, 112
    %v238 = vpop.permute.xlu0 %237
    %v241 = vadd.f32 %v214, %v236
    %v242 = vadd.f32 %v215, %v238
    %v243 = vlaneseq
    %v244 = vshrl.u32 %v243, 7
    %v245 = vsub.s32 0, %v244
    %v246 = vrot.slane %v32, %v245
    %248 = vrot.lane.b32.xlu0 %v246, 32
    %v249 = vpop.permute.xlu0 %248
    %v251 = vmul.f32 %v73, %v249
    %v252 = vmul.f32 %v249, 0.0
    %v253 = vmul.f32 %v74, %v249
    %v254 = vmul.f32 %v75, %v249
    %v259 = vrot.slane %v251, 2
    %v260 = vrot.slane %v253, 2
    %v261 = vsel %vm206, %v259, %v260
    %v262 = vrot.slane %v252, 2
    %v263 = vsel %vm206, %v262, %v262
    %v264 = vrot.slane %v254, 2
    %v265 = vsel %vm206, %v264, %v260
    %266 = vrot.lane.b32.xlu0 %v261, 96
    %v267 = vpop.permute.xlu0 %266
    %268 = vrot.lane.b32.xlu0 %v263, 96
    %v269 = vpop.permute.xlu0 %268
    %270 = vrot.lane.b32.xlu0 %v265, 96
    %v271 = vpop.permute.xlu0 %270
    %v272 = vsel %vm124, %v267, %v269
    %v273 = vsel %vm124, %v271, %v269
    %v276 = vadd.f32 %v241, %v272
    %v277 = vadd.f32 %v242, %v273
    %v279 = vlaneseq
    %v280 = vshrl.u32 %v279, 7
    %v281 = vsub.s32 0, %v280
    %v282 = vrot.slane %v33, %v281
    %v284 = vadd.f32 %v276, %v282
    %v285 = vadd.f32 %v277, %v282
    %v286 = vmax.f32 %v284, 0.0
    %v287 = vmax.f32 %v285, 0.0
    %290 = vrot.lane.b32.xlu0 %v286, 112
    %v291 = vpop.permute.xlu0 %290
    %292 = vrot.lane.b32.xlu0 %v287, 112
    %v293 = vpop.permute.xlu0 %292
    %v296 = vadd.f32 %v286, %v291
    %v297 = vadd.f32 %v287, %v293
    %298 = vrot.lane.b32.xlu0 %v286, 96
    %v299 = vpop.permute.xlu0 %298
    %300 = vrot.lane.b32.xlu0 %v287, 96
    %v301 = vpop.permute.xlu0 %300
    %v304 = vadd.f32 %v296, %v299
    %v305 = vadd.f32 %v297, %v301
    %306 = vrot.lane.b32.xlu0 %v286, 80
    %v307 = vpop.permute.xlu0 %306
    %308 = vrot.lane.b32.xlu0 %v287, 80
    %v309 = vpop.permute.xlu0 %308
    %v312 = vadd.f32 %v304, %v307
    %v313 = vadd.f32 %v305, %v309
    %314 = vrot.lane.b32.xlu0 %v286, 64
    %v315 = vpop.permute.xlu0 %314
    %316 = vrot.lane.b32.xlu0 %v287, 64
    %v317 = vpop.permute.xlu0 %316
    %v320 = vadd.f32 %v312, %v315
    %v321 = vadd.f32 %v313, %v317
    %322 = vrot.lane.b32.xlu0 %v286, 48
    %v323 = vpop.permute.xlu0 %322
    %324 = vrot.lane.b32.xlu0 %v287, 48
    %v325 = vpop.permute.xlu0 %324
    %v328 = vadd.f32 %v320, %v323
    %v329 = vadd.f32 %v321, %v325
    %330 = vrot.lane.b32.xlu0 %v286, 32
    %v331 = vpop.permute.xlu0 %330
    %332 = vrot.lane.b32.xlu0 %v287, 32
    %v333 = vpop.permute.xlu0 %332
    %v336 = vadd.f32 %v328, %v331
    %v337 = vadd.f32 %v329, %v333
    %vm338 = vcmask 129024
    %v339 = vsel %vm338, %v336, 0.0
    %v340 = vrot.slane %v339, 4
    %v341 = vadd.f32 %v339, %v340
    %v342 = vrot.slane %v341, 2
    %v343 = vadd.f32 %v341, %v342
    %v344 = vrot.slane %v343, 1
    %v345 = vadd.f32 %v343, %v344
    %v346 = vsel %vm338, %v337, 0.0
    %v347 = vrot.slane %v346, 4
    %v348 = vadd.f32 %v346, %v347
    %v349 = vrot.slane %v348, 2
    %v350 = vadd.f32 %v348, %v349
    %v351 = vrot.slane %v350, 1
    %v352 = vadd.f32 %v350, %v351
    %v353 = vmul.f32 %v345, 0.020408163
    %v354 = vmul.f32 %v352, 0.020408163
    %v355 = vcombine.high %v286, %v286
    %v357 = vunpack.c.l.s4 1966171168
    %v358 = vunpack.c.0.s8 %v357
    %v359 = vlaneseq
    %v360 = vshrl.u32 %v359, 7
    %v361 = vsub.s32 %v358, %v360
    %v362 = vrot.slane %v286, %v361
    %v364 = vunpack.c.l.s4 1966171168
    %v365 = vunpack.c.0.s8 %v364
    %v366 = vlaneseq
    %v367 = vshrl.u32 %v366, 7
    %v368 = vsub.s32 %v365, %v367
    %v369 = vrot.slane %v355, %v368
    %v370 = vcombine.high %v362, %v362
    %v371 = vcombine.high %v369, %v369
    %v373 = vunpack.c.l.s4 1966171168
    %v374 = vunpack.c.0.s8 %v373
    %v375 = vlaneseq
    %v376 = vshrl.u32 %v375, 7
    %v377 = vsub.s32 %v374, %v376
    %v378 = vrot.slane %v362, %v377
    %v380 = vunpack.c.l.s4 1966171168
    %v381 = vunpack.c.0.s8 %v380
    %v382 = vlaneseq
    %v383 = vshrl.u32 %v382, 7
    %v384 = vsub.s32 %v381, %v383
    %v385 = vrot.slane %v369, %v384
    %v387 = vunpack.c.l.s4 1966171168
    %v388 = vunpack.c.0.s8 %v387
    %v389 = vlaneseq
    %v390 = vshrl.u32 %v389, 7
    %v391 = vsub.s32 %v388, %v390
    %v392 = vrot.slane %v370, %v391
    %v394 = vunpack.c.l.s4 1966171168
    %v395 = vunpack.c.0.s8 %v394
    %v396 = vlaneseq
    %v397 = vshrl.u32 %v396, 7
    %v398 = vsub.s32 %v395, %v397
    %v399 = vrot.slane %v371, %v398
    %v400 = vcombine.high %v378, %v378
    %v401 = vcombine.high %v385, %v385
    %v402 = vcombine.high %v392, %v392
    %v403 = vcombine.high %v287, %v287
    %v405 = vunpack.c.l.s4 1966171168
    %v406 = vunpack.c.0.s8 %v405
    %v407 = vlaneseq
    %v408 = vshrl.u32 %v407, 7
    %v409 = vsub.s32 %v406, %v408
    %v410 = vrot.slane %v287, %v409
    %v412 = vunpack.c.l.s4 1966171168
    %v413 = vunpack.c.0.s8 %v412
    %v414 = vlaneseq
    %v415 = vshrl.u32 %v414, 7
    %v416 = vsub.s32 %v413, %v415
    %v417 = vrot.slane %v403, %v416
    %v418 = vcombine.high %v410, %v410
    %v419 = vcombine.high %v417, %v417
    %v421 = vunpack.c.l.s4 1966171168
    %v422 = vunpack.c.0.s8 %v421
    %v423 = vlaneseq
    %v424 = vshrl.u32 %v423, 7
    %v425 = vsub.s32 %v422, %v424
    %v426 = vrot.slane %v410, %v425
    %v428 = vunpack.c.l.s4 1966171168
    %v429 = vunpack.c.0.s8 %v428
    %v430 = vlaneseq
    %v431 = vshrl.u32 %v430, 7
    %v432 = vsub.s32 %v429, %v431
    %v433 = vrot.slane %v417, %v432
    %v435 = vunpack.c.l.s4 1966171168
    %v436 = vunpack.c.0.s8 %v435
    %v437 = vlaneseq
    %v438 = vshrl.u32 %v437, 7
    %v439 = vsub.s32 %v436, %v438
    %v440 = vrot.slane %v418, %v439
    %v442 = vunpack.c.l.s4 1966171168
    %v443 = vunpack.c.0.s8 %v442
    %v444 = vlaneseq
    %v445 = vshrl.u32 %v444, 7
    %v446 = vsub.s32 %v443, %v445
    %v447 = vrot.slane %v419, %v446
    %v448 = vcombine.high %v426, %v426
    %v449 = vcombine.high %v433, %v433
    %v450 = vcombine.high %v440, %v440
    %v451 = vcombine.low %v378, %v392
    %v452 = vcombine.low %v400, %v402
    %v453 = vcombine.low %v385, %v399
    %v454 = vcombine.low %v401, %v426
    %v456 = vunpack.c.l.s4 1966171168
    %v457 = vunpack.c.0.s8 %v456
    %v458 = vlaneseq
    %v459 = vshrl.u32 %v458, 7
    %v460 = vsub.s32 %v457, %v459
    %v461 = vrot.slane %v451, %v460
    %v463 = vunpack.c.l.s4 1966171168
    %v464 = vunpack.c.0.s8 %v463
    %v465 = vlaneseq
    %v466 = vshrl.u32 %v465, 7
    %v467 = vsub.s32 %v464, %v466
    %v468 = vrot.slane %v452, %v467
    %v470 = vunpack.c.l.s4 1966171168
    %v471 = vunpack.c.0.s8 %v470
    %v472 = vlaneseq
    %v473 = vshrl.u32 %v472, 7
    %v474 = vsub.s32 %v471, %v473
    %v475 = vrot.slane %v453, %v474
    %v477 = vunpack.c.l.s4 1966171168
    %v478 = vunpack.c.0.s8 %v477
    %v479 = vlaneseq
    %v480 = vshrl.u32 %v479, 7
    %v481 = vsub.s32 %v478, %v480
    %v482 = vrot.slane %v454, %v481
    %v483 = vcombine.low %v461, %v468
    %v484 = vcombine.low %v475, %v482
    %v486 = vunpack.c.l.s4 1966171168
    %v487 = vunpack.c.0.s8 %v486
    %v488 = vlaneseq
    %v489 = vshrl.u32 %v488, 7
    %v490 = vsub.s32 %v487, %v489
    %v491 = vrot.slane %v483, %v490
    %v493 = vunpack.c.l.s4 1966171168
    %v494 = vunpack.c.0.s8 %v493
    %v495 = vlaneseq
    %v496 = vshrl.u32 %v495, 7
    %v497 = vsub.s32 %v494, %v496
    %v498 = vrot.slane %v484, %v497
    %v499 = vcombine.low %v491, %v498
    %v500 = vcombine.low %v440, %v448
    %v501 = vcombine.low %v450, %v433
    %v502 = vcombine.low %v447, %v449
    %v504 = vunpack.c.l.s4 1966171168
    %v505 = vunpack.c.0.s8 %v504
    %v506 = vlaneseq
    %v507 = vshrl.u32 %v506, 7
    %v508 = vsub.s32 %v505, %v507
    %v509 = vrot.slane %v500, %v508
    %v511 = vunpack.c.l.s4 1966171168
    %v512 = vunpack.c.0.s8 %v511
    %v513 = vlaneseq
    %v514 = vshrl.u32 %v513, 7
    %v515 = vsub.s32 %v512, %v514
    %v516 = vrot.slane %v501, %v515
    %v518 = vunpack.c.l.s4 1966171168
    %v519 = vunpack.c.0.s8 %v518
    %v520 = vlaneseq
    %v521 = vshrl.u32 %v520, 7
    %v522 = vsub.s32 %v519, %v521
    %v523 = vrot.slane %v502, %v522
    %v524 = vcombine.low %v509, %v516
    %v526 = vunpack.c.l.s4 1966171168
    %v527 = vunpack.c.0.s8 %v526
    %v528 = vlaneseq
    %v529 = vshrl.u32 %v528, 7
    %v530 = vsub.s32 %v527, %v529
    %v531 = vrot.slane %v524, %v530
    %v533 = vunpack.c.l.s4 1966171168
    %v534 = vunpack.c.0.s8 %v533
    %v535 = vlaneseq
    %v536 = vshrl.u32 %v535, 7
    %v537 = vsub.s32 %v534, %v536
    %v538 = vrot.slane %v523, %v537
    %v539 = vcombine.low %v531, %v538
    %v542 = vpack.c.bf16 %v539, %v499
    %v557 = vunpack.c.l.b16 %v34
    %v558 = vunpack.c.l.b16 %v35
    %v559 = vunpack.c.l.b16 %v36
    %v560 = vunpack.c.l.b16 %v37
    %v561 = vunpack.c.l.b16 %v38
    %v562 = vunpack.c.l.b16 %v39
    %v563 = vunpack.c.l.b16 %v40
    %v564 = vunpack.c.l.b16 %v41
    %v565 = vunpack.c.l.b16 %v42
    %v566 = vunpack.c.l.b16 %v43
    %v567 = vunpack.c.l.b16 %v44
    %v568 = vunpack.c.l.b16 %v45
    %v569 = vunpack.c.l.b16 %v46
    %v570 = vunpack.c.l.b16 %v47
    %v571 = vpack.c.b16 %v558, %v557
    %v572 = vpack.c.b16 %v560, %v559
    %v573 = vpack.c.b16 %v562, %v561
    %v574 = vpack.c.b16 %v564, %v563
    %v575 = vpack.c.b16 %v566, %v565
    %v576 = vpack.c.b16 %v568, %v567
    %v577 = vpack.c.b16 %v570, %v569
    %vm585 = vcmask 916480
    %v587 = vsel %vm585, %v542, 0
    %589 = vmatprep.subr.bf16.mxu0 0
    %590 = vmatpush1.bf16.msra.mxu0 %v571
    %591 = vmatprep.subr.bf16.mxu0 0
    %592 = vmatpush1.bf16.msra.mxu0 %v572
    %593 = vmatprep.subr.bf16.mxu0 0
    %594 = vmatpush1.bf16.msra.mxu0 %v573
    %595 = vmatprep.subr.bf16.mxu0 0
    %596 = vmatpush1.bf16.msra.mxu0 %v574
    %597 = vmatprep.subr.bf16.mxu0 0
    %598 = vmatpush1.bf16.msra.mxu0 %v575
    %599 = vmatprep.subr.bf16.mxu0 0
    %600 = vmatpush1.bf16.msra.mxu0 %v576
    %601 = vmatprep.subr.bf16.mxu0 0
    %602 = vmatpush1.bf16.msra.mxu0 %v577
    %603 = vmatprep.subr.bf16.mxu0 0
    %604 = vmatpush1.bf16.msra.mxu0 0
    %605 = vmatprep.subr.bf16.mxu0 0
    %606 = vmatpush1.bf16.msra.mxu0 0
    %607 = vmatprep.subr.bf16.mxu0 0
    %608 = vmatpush1.bf16.msra.mxu0 0
    %609 = vmatprep.subr.bf16.mxu0 0
    %610 = vmatpush1.bf16.msra.mxu0 0
    %611 = vmatprep.subr.bf16.mxu0 0
    %612 = vmatpush1.bf16.msra.mxu0 0
    %613 = vmatprep.subr.bf16.mxu0 0
    %614 = vmatpush1.bf16.msra.mxu0 0
    %615 = vmatprep.subr.bf16.mxu0 0
    %616 = vmatpush1.bf16.msra.mxu0 0
    %617 = vmatprep.subr.bf16.mxu0 0
    %618 = vmatpush1.bf16.msra.mxu0 0
    %619 = vmatprep.subr.bf16.mxu0 0
    %620 = vmatpush1.bf16.msra.mxu0 0
    %621 = vmatprep.mubr.bf16.mxu0 0
    %622 = vmatmul.mubr.bf16.gmra.mrb[0].mxu0 %v587
    %v623 = vpop.f32.mrb[0].mxu0
    %v624 = vadd.f32 0.0, %v623
    %v625 = vpop.f32.mrb[0].mxu0
    %v626 = vpop.f32.mrb[0].mxu0
    %v627 = vadd.f32 0.0, %v626
    %v628 = vpop.f32.mrb[0].mxu0
    %629 = vdwg.mxu0
    %v632 = vcombine.high %v624, %v624
    %v634 = vunpack.c.l.s4 1966171168
    %v635 = vunpack.c.0.s8 %v634
    %v636 = vlaneseq
    %v637 = vshrl.u32 %v636, 7
    %v638 = vsub.s32 %v635, %v637
    %v639 = vrot.slane %v624, %v638
    %v641 = vunpack.c.l.s4 1966171168
    %v642 = vunpack.c.0.s8 %v641
    %v643 = vlaneseq
    %v644 = vshrl.u32 %v643, 7
    %v645 = vsub.s32 %v642, %v644
    %v646 = vrot.slane %v632, %v645
    %v647 = vcombine.high %v639, %v639
    %v648 = vcombine.high %v646, %v646
    %v650 = vunpack.c.l.s4 1966171168
    %v651 = vunpack.c.0.s8 %v650
    %v652 = vlaneseq
    %v653 = vshrl.u32 %v652, 7
    %v654 = vsub.s32 %v651, %v653
    %v655 = vrot.slane %v639, %v654
    %v657 = vunpack.c.l.s4 1966171168
    %v658 = vunpack.c.0.s8 %v657
    %v659 = vlaneseq
    %v660 = vshrl.u32 %v659, 7
    %v661 = vsub.s32 %v658, %v660
    %v662 = vrot.slane %v646, %v661
    %v664 = vunpack.c.l.s4 1966171168
    %v665 = vunpack.c.0.s8 %v664
    %v666 = vlaneseq
    %v667 = vshrl.u32 %v666, 7
    %v668 = vsub.s32 %v665, %v667
    %v669 = vrot.slane %v647, %v668
    %v671 = vunpack.c.l.s4 1966171168
    %v672 = vunpack.c.0.s8 %v671
    %v673 = vlaneseq
    %v674 = vshrl.u32 %v673, 7
    %v675 = vsub.s32 %v672, %v674
    %v676 = vrot.slane %v648, %v675
    %v677 = vcombine.high %v655, %v655
    %v678 = vcombine.high %v662, %v662
    %v679 = vcombine.high %v669, %v669
    %v680 = vcombine.high %v676, %v676
    %v681 = vcombine.high %v627, %v627
    %v683 = vunpack.c.l.s4 1966171168
    %v684 = vunpack.c.0.s8 %v683
    %v685 = vlaneseq
    %v686 = vshrl.u32 %v685, 7
    %v687 = vsub.s32 %v684, %v686
    %v688 = vrot.slane %v627, %v687
    %v690 = vunpack.c.l.s4 1966171168
    %v691 = vunpack.c.0.s8 %v690
    %v692 = vlaneseq
    %v693 = vshrl.u32 %v692, 7
    %v694 = vsub.s32 %v691, %v693
    %v695 = vrot.slane %v681, %v694
    %v696 = vcombine.high %v688, %v688
    %v697 = vcombine.high %v695, %v695
    %v699 = vunpack.c.l.s4 1966171168
    %v700 = vunpack.c.0.s8 %v699
    %v701 = vlaneseq
    %v702 = vshrl.u32 %v701, 7
    %v703 = vsub.s32 %v700, %v702
    %v704 = vrot.slane %v688, %v703
    %v706 = vunpack.c.l.s4 1966171168
    %v707 = vunpack.c.0.s8 %v706
    %v708 = vlaneseq
    %v709 = vshrl.u32 %v708, 7
    %v710 = vsub.s32 %v707, %v709
    %v711 = vrot.slane %v695, %v710
    %v713 = vunpack.c.l.s4 1966171168
    %v714 = vunpack.c.0.s8 %v713
    %v715 = vlaneseq
    %v716 = vshrl.u32 %v715, 7
    %v717 = vsub.s32 %v714, %v716
    %v718 = vrot.slane %v696, %v717
    %v720 = vunpack.c.l.s4 1966171168
    %v721 = vunpack.c.0.s8 %v720
    %v722 = vlaneseq
    %v723 = vshrl.u32 %v722, 7
    %v724 = vsub.s32 %v721, %v723
    %v725 = vrot.slane %v697, %v724
    %v726 = vcombine.high %v704, %v704
    %v727 = vcombine.high %v718, %v718
    %v743 = vlaneseq
    %v744 = vshrl.u32 %v743, 7
    %v745 = vsub.s32 0, %v744
    %v746 = vrot.slane %v48, %v745
    %v747 = vcombine.high %v746, %v746
    %v749 = vunpack.c.l.s4 1966171168
    %v750 = vunpack.c.0.s8 %v749
    %v751 = vlaneseq
    %v752 = vshrl.u32 %v751, 7
    %v753 = vsub.s32 %v750, %v752
    %v754 = vrot.slane %v746, %v753
    %v756 = vunpack.c.l.s4 1966171168
    %v757 = vunpack.c.0.s8 %v756
    %v758 = vlaneseq
    %v759 = vshrl.u32 %v758, 7
    %v760 = vsub.s32 %v757, %v759
    %v761 = vrot.slane %v747, %v760
    %v762 = vcombine.high %v754, %v754
    %v763 = vcombine.high %v761, %v761
    %v765 = vunpack.c.l.s4 1966171168
    %v766 = vunpack.c.0.s8 %v765
    %v767 = vlaneseq
    %v768 = vshrl.u32 %v767, 7
    %v769 = vsub.s32 %v766, %v768
    %v770 = vrot.slane %v754, %v769
    %v772 = vunpack.c.l.s4 1966171168
    %v773 = vunpack.c.0.s8 %v772
    %v774 = vlaneseq
    %v775 = vshrl.u32 %v774, 7
    %v776 = vsub.s32 %v773, %v775
    %v777 = vrot.slane %v761, %v776
    %v779 = vunpack.c.l.s4 1966171168
    %v780 = vunpack.c.0.s8 %v779
    %v781 = vlaneseq
    %v782 = vshrl.u32 %v781, 7
    %v783 = vsub.s32 %v780, %v782
    %v784 = vrot.slane %v762, %v783
    %v786 = vunpack.c.l.s4 1966171168
    %v787 = vunpack.c.0.s8 %v786
    %v788 = vlaneseq
    %v789 = vshrl.u32 %v788, 7
    %v790 = vsub.s32 %v787, %v789
    %v791 = vrot.slane %v763, %v790
    %v792 = vcombine.high %v770, %v770
    %v793 = vcombine.high %v777, %v777
    %v794 = vcombine.high %v784, %v784
    %v802 = vadd.f32 %v655, %v770
    %v803 = vadd.f32 %v669, %v784
    %v804 = vadd.f32 %v677, %v792
    %v805 = vadd.f32 %v679, %v794
    %v806 = vadd.f32 %v662, %v777
    %v807 = vadd.f32 %v676, %v791
    %v808 = vadd.f32 %v678, %v793
    %v809 = vadd.f32 %v680, %v770
    %v810 = vadd.f32 %v704, %v784
    %v811 = vadd.f32 %v718, %v792
    %v812 = vadd.f32 %v726, %v794
    %v813 = vadd.f32 %v727, %v777
    %v814 = vadd.f32 %v711, %v791
    %v815 = vadd.f32 %v725, %v793
    %v816 = vld [vmem:[%s1] sm:$0x7f]
    %v817 = vld [vmem:[%s1 + $0x8] sm:$0x7f]
    %v820 = vrot.slane %v816, 7
    %v821 = vrot.slane %v817, 7
    %v824 = vsel %vm57, 0.0, %v820
    %v825 = vsel %vm57, 0.0, %v821
    %828 = vrot.lane.b32.xlu0 %v824, 16
    %v829 = vpop.permute.xlu0 %828
    %830 = vrot.lane.b32.xlu0 %v825, 16
    %v831 = vpop.permute.xlu0 %830
    %v834 = vsel %vm72, 0.0, %v829
    %v835 = vsel %vm72, 0.0, %v831
    %v836 = vmul.f32 %v834, %v79
    %v837 = vmul.f32 %v835, %v79
    %v838 = vadd.f32 %v836, 0.0
    %v839 = vadd.f32 %v837, 0.0
    %v840 = vmul.f32 %v834, %v90
    %v841 = vmul.f32 %v835, %v90
    %844 = vrot.lane.b32.xlu0 %v840, 112
    %v845 = vpop.permute.xlu0 %844
    %846 = vrot.lane.b32.xlu0 %v841, 112
    %v847 = vpop.permute.xlu0 %846
    %v850 = vadd.f32 %v838, %v845
    %v851 = vadd.f32 %v839, %v847
    %v852 = vmul.f32 %v834, %v110
    %v853 = vmul.f32 %v835, %v110
    %856 = vrot.lane.b32.xlu0 %v852, 96
    %v857 = vpop.permute.xlu0 %856
    %858 = vrot.lane.b32.xlu0 %v853, 96
    %v859 = vpop.permute.xlu0 %858
    %v860 = vsel %vm124, %v857, %v121
    %v861 = vsel %vm124, %v859, %v121
    %v864 = vadd.f32 %v850, %v860
    %v865 = vadd.f32 %v851, %v861
    %v866 = vmul.f32 %v834, %v134
    %v867 = vmul.f32 %v835, %v134
    %v870 = vrot.slane %v866, 1
    %v871 = vrot.slane %v867, 1
    %v874 = vadd.f32 %v864, %v870
    %v875 = vadd.f32 %v865, %v871
    %v876 = vmul.f32 %v834, %v151
    %v877 = vmul.f32 %v835, %v151
    %v880 = vrot.slane %v876, 1
    %v881 = vrot.slane %v877, 1
    %882 = vrot.lane.b32.xlu0 %v880, 112
    %v883 = vpop.permute.xlu0 %882
    %884 = vrot.lane.b32.xlu0 %v881, 112
    %v885 = vpop.permute.xlu0 %884
    %v888 = vadd.f32 %v874, %v883
    %v889 = vadd.f32 %v875, %v885
    %v890 = vmul.f32 %v834, %v173
    %v891 = vmul.f32 %v835, %v173
    %v894 = vrot.slane %v890, 1
    %v895 = vrot.slane %v891, 1
    %896 = vrot.lane.b32.xlu0 %v894, 96
    %v897 = vpop.permute.xlu0 %896
    %898 = vrot.lane.b32.xlu0 %v895, 96
    %v899 = vpop.permute.xlu0 %898
    %v900 = vsel %vm124, %v897, %v187
    %v901 = vsel %vm124, %v899, %v187
    %v904 = vadd.f32 %v888, %v900
    %v905 = vadd.f32 %v889, %v901
    %v906 = vmul.f32 %v834, %v199
    %v907 = vmul.f32 %v835, %v199
    %v910 = vrot.slane %v906, 2
    %v911 = vsel %vm206, %v910, %v208
    %v912 = vrot.slane %v907, 2
    %v913 = vsel %vm206, %v912, %v208
    %v916 = vadd.f32 %v904, %v911
    %v917 = vadd.f32 %v905, %v913
    %v918 = vmul.f32 %v834, %v222
    %v919 = vmul.f32 %v835, %v222
    %v922 = vrot.slane %v918, 2
    %v923 = vsel %vm206, %v922, %v231
    %v924 = vrot.slane %v919, 2
    %v925 = vsel %vm206, %v924, %v231
    %926 = vrot.lane.b32.xlu0 %v923, 112
    %v927 = vpop.permute.xlu0 %926
    %928 = vrot.lane.b32.xlu0 %v925, 112
    %v929 = vpop.permute.xlu0 %928
    %v932 = vadd.f32 %v916, %v927
    %v933 = vadd.f32 %v917, %v929
    %v934 = vmul.f32 %v834, %v249
    %v935 = vmul.f32 %v835, %v249
    %v938 = vrot.slane %v934, 2
    %v939 = vsel %vm206, %v938, %v260
    %v940 = vrot.slane %v935, 2
    %v941 = vsel %vm206, %v940, %v260
    %942 = vrot.lane.b32.xlu0 %v939, 96
    %v943 = vpop.permute.xlu0 %942
    %944 = vrot.lane.b32.xlu0 %v941, 96
    %v945 = vpop.permute.xlu0 %944
    %v946 = vsel %vm124, %v943, %v269
    %v947 = vsel %vm124, %v945, %v269
    %v950 = vadd.f32 %v932, %v946
    %v951 = vadd.f32 %v933, %v947
    %v952 = vadd.f32 %v950, %v282
    %v953 = vadd.f32 %v951, %v282
    %v954 = vmax.f32 %v952, 0.0
    %v955 = vmax.f32 %v953, 0.0
    %958 = vrot.lane.b32.xlu0 %v954, 112
    %v959 = vpop.permute.xlu0 %958
    %960 = vrot.lane.b32.xlu0 %v955, 112
    %v961 = vpop.permute.xlu0 %960
    %v964 = vadd.f32 %v954, %v959
    %v965 = vadd.f32 %v955, %v961
    %966 = vrot.lane.b32.xlu0 %v954, 96
    %v967 = vpop.permute.xlu0 %966
    %968 = vrot.lane.b32.xlu0 %v955, 96
    %v969 = vpop.permute.xlu0 %968
    %v972 = vadd.f32 %v964, %v967
    %v973 = vadd.f32 %v965, %v969
    %974 = vrot.lane.b32.xlu0 %v954, 80
    %v975 = vpop.permute.xlu0 %974
    %976 = vrot.lane.b32.xlu0 %v955, 80
    %v977 = vpop.permute.xlu0 %976
    %v980 = vadd.f32 %v972, %v975
    %v981 = vadd.f32 %v973, %v977
    %982 = vrot.lane.b32.xlu0 %v954, 64
    %v983 = vpop.permute.xlu0 %982
    %984 = vrot.lane.b32.xlu0 %v955, 64
    %v985 = vpop.permute.xlu0 %984
    %v988 = vadd.f32 %v980, %v983
    %v989 = vadd.f32 %v981, %v985
    %990 = vrot.lane.b32.xlu0 %v954, 48
    %v991 = vpop.permute.xlu0 %990
    %992 = vrot.lane.b32.xlu0 %v955, 48
    %v993 = vpop.permute.xlu0 %992
    %v996 = vadd.f32 %v988, %v991
    %v997 = vadd.f32 %v989, %v993
    %998 = vrot.lane.b32.xlu0 %v954, 32
    %v999 = vpop.permute.xlu0 %998
    %1000 = vrot.lane.b32.xlu0 %v955, 32
    %v1001 = vpop.permute.xlu0 %1000
    %v1004 = vadd.f32 %v996, %v999
    %v1005 = vadd.f32 %v997, %v1001
    %v1006 = vsel %vm338, %v1004, 0.0
    %v1007 = vrot.slane %v1006, 4
    %v1008 = vadd.f32 %v1006, %v1007
    %v1009 = vrot.slane %v1008, 2
    %v1010 = vadd.f32 %v1008, %v1009
    %v1011 = vrot.slane %v1010, 1
    %v1012 = vadd.f32 %v1010, %v1011
    %v1013 = vsel %vm338, %v1005, 0.0
    %v1014 = vrot.slane %v1013, 4
    %v1015 = vadd.f32 %v1013, %v1014
    %v1016 = vrot.slane %v1015, 2
    %v1017 = vadd.f32 %v1015, %v1016
    %v1018 = vrot.slane %v1017, 1
    %v1019 = vadd.f32 %v1017, %v1018
    %v1020 = vmul.f32 %v1012, 0.020408163
    %v1021 = vmul.f32 %v1019, 0.020408163
    %v1022 = vcombine.high %v954, %v954
    %v1024 = vunpack.c.l.s4 1966171168
    %v1025 = vunpack.c.0.s8 %v1024
    %v1026 = vlaneseq
    %v1027 = vshrl.u32 %v1026, 7
    %v1028 = vsub.s32 %v1025, %v1027
    %v1029 = vrot.slane %v954, %v1028
    %v1031 = vunpack.c.l.s4 1966171168
    %v1032 = vunpack.c.0.s8 %v1031
    %v1033 = vlaneseq
    %v1034 = vshrl.u32 %v1033, 7
    %v1035 = vsub.s32 %v1032, %v1034
    %v1036 = vrot.slane %v1022, %v1035
    %v1037 = vcombine.high %v1029, %v1029
    %v1038 = vcombine.high %v1036, %v1036
    %v1040 = vunpack.c.l.s4 1966171168
    %v1041 = vunpack.c.0.s8 %v1040
    %v1042 = vlaneseq
    %v1043 = vshrl.u32 %v1042, 7
    %v1044 = vsub.s32 %v1041, %v1043
    %v1045 = vrot.slane %v1029, %v1044
    %v1047 = vunpack.c.l.s4 1966171168
    %v1048 = vunpack.c.0.s8 %v1047
    %v1049 = vlaneseq
    %v1050 = vshrl.u32 %v1049, 7
    %v1051 = vsub.s32 %v1048, %v1050
    %v1052 = vrot.slane %v1036, %v1051
    %v1054 = vunpack.c.l.s4 1966171168
    %v1055 = vunpack.c.0.s8 %v1054
    %v1056 = vlaneseq
    %v1057 = vshrl.u32 %v1056, 7
    %v1058 = vsub.s32 %v1055, %v1057
    %v1059 = vrot.slane %v1037, %v1058
    %v1061 = vunpack.c.l.s4 1966171168
    %v1062 = vunpack.c.0.s8 %v1061
    %v1063 = vlaneseq
    %v1064 = vshrl.u32 %v1063, 7
    %v1065 = vsub.s32 %v1062, %v1064
    %v1066 = vrot.slane %v1038, %v1065
    %v1067 = vcombine.high %v1045, %v1045
    %v1068 = vcombine.high %v1052, %v1052
    %v1069 = vcombine.high %v1059, %v1059
    %v1070 = vcombine.high %v955, %v955
    %v1072 = vunpack.c.l.s4 1966171168
    %v1073 = vunpack.c.0.s8 %v1072
    %v1074 = vlaneseq
    %v1075 = vshrl.u32 %v1074, 7
    %v1076 = vsub.s32 %v1073, %v1075
    %v1077 = vrot.slane %v955, %v1076
    %v1079 = vunpack.c.l.s4 1966171168
    %v1080 = vunpack.c.0.s8 %v1079
    %v1081 = vlaneseq
    %v1082 = vshrl.u32 %v1081, 7
    %v1083 = vsub.s32 %v1080, %v1082
    %v1084 = vrot.slane %v1070, %v1083
    %v1085 = vcombine.high %v1077, %v1077
    %v1086 = vcombine.high %v1084, %v1084
    %v1088 = vunpack.c.l.s4 1966171168
    %v1089 = vunpack.c.0.s8 %v1088
    %v1090 = vlaneseq
    %v1091 = vshrl.u32 %v1090, 7
    %v1092 = vsub.s32 %v1089, %v1091
    %v1093 = vrot.slane %v1077, %v1092
    %v1095 = vunpack.c.l.s4 1966171168
    %v1096 = vunpack.c.0.s8 %v1095
    %v1097 = vlaneseq
    %v1098 = vshrl.u32 %v1097, 7
    %v1099 = vsub.s32 %v1096, %v1098
    %v1100 = vrot.slane %v1084, %v1099
    %v1102 = vunpack.c.l.s4 1966171168
    %v1103 = vunpack.c.0.s8 %v1102
    %v1104 = vlaneseq
    %v1105 = vshrl.u32 %v1104, 7
    %v1106 = vsub.s32 %v1103, %v1105
    %v1107 = vrot.slane %v1085, %v1106
    %v1109 = vunpack.c.l.s4 1966171168
    %v1110 = vunpack.c.0.s8 %v1109
    %v1111 = vlaneseq
    %v1112 = vshrl.u32 %v1111, 7
    %v1113 = vsub.s32 %v1110, %v1112
    %v1114 = vrot.slane %v1086, %v1113
    %v1115 = vcombine.high %v1093, %v1093
    %v1116 = vcombine.high %v1100, %v1100
    %v1117 = vcombine.high %v1107, %v1107
    %v1118 = vcombine.low %v1045, %v1059
    %v1119 = vcombine.low %v1067, %v1069
    %v1120 = vcombine.low %v1052, %v1066
    %v1121 = vcombine.low %v1068, %v1093
    %v1123 = vunpack.c.l.s4 1966171168
    %v1124 = vunpack.c.0.s8 %v1123
    %v1125 = vlaneseq
    %v1126 = vshrl.u32 %v1125, 7
    %v1127 = vsub.s32 %v1124, %v1126
    %v1128 = vrot.slane %v1118, %v1127
    %v1130 = vunpack.c.l.s4 1966171168
    %v1131 = vunpack.c.0.s8 %v1130
    %v1132 = vlaneseq
    %v1133 = vshrl.u32 %v1132, 7
    %v1134 = vsub.s32 %v1131, %v1133
    %v1135 = vrot.slane %v1119, %v1134
    %v1137 = vunpack.c.l.s4 1966171168
    %v1138 = vunpack.c.0.s8 %v1137
    %v1139 = vlaneseq
    %v1140 = vshrl.u32 %v1139, 7
    %v1141 = vsub.s32 %v1138, %v1140
    %v1142 = vrot.slane %v1120, %v1141
    %v1144 = vunpack.c.l.s4 1966171168
    %v1145 = vunpack.c.0.s8 %v1144
    %v1146 = vlaneseq
    %v1147 = vshrl.u32 %v1146, 7
    %v1148 = vsub.s32 %v1145, %v1147
    %v1149 = vrot.slane %v1121, %v1148
    %v1150 = vcombine.low %v1128, %v1135
    %v1151 = vcombine.low %v1142, %v1149
    %v1153 = vunpack.c.l.s4 1966171168
    %v1154 = vunpack.c.0.s8 %v1153
    %v1155 = vlaneseq
    %v1156 = vshrl.u32 %v1155, 7
    %v1157 = vsub.s32 %v1154, %v1156
    %v1158 = vrot.slane %v1150, %v1157
    %v1160 = vunpack.c.l.s4 1966171168
    %v1161 = vunpack.c.0.s8 %v1160
    %v1162 = vlaneseq
    %v1163 = vshrl.u32 %v1162, 7
    %v1164 = vsub.s32 %v1161, %v1163
    %v1165 = vrot.slane %v1151, %v1164
    %v1166 = vcombine.low %v1158, %v1165
    %v1167 = vcombine.low %v1107, %v1115
    %v1168 = vcombine.low %v1117, %v1100
    %v1169 = vcombine.low %v1114, %v1116
    %v1171 = vunpack.c.l.s4 1966171168
    %v1172 = vunpack.c.0.s8 %v1171
    %v1173 = vlaneseq
    %v1174 = vshrl.u32 %v1173, 7
    %v1175 = vsub.s32 %v1172, %v1174
    %v1176 = vrot.slane %v1167, %v1175
    %v1178 = vunpack.c.l.s4 1966171168
    %v1179 = vunpack.c.0.s8 %v1178
    %v1180 = vlaneseq
    %v1181 = vshrl.u32 %v1180, 7
    %v1182 = vsub.s32 %v1179, %v1181
    %v1183 = vrot.slane %v1168, %v1182
    %v1185 = vunpack.c.l.s4 1966171168
    %v1186 = vunpack.c.0.s8 %v1185
    %v1187 = vlaneseq
    %v1188 = vshrl.u32 %v1187, 7
    %v1189 = vsub.s32 %v1186, %v1188
    %v1190 = vrot.slane %v1169, %v1189
    %v1191 = vcombine.low %v1176, %v1183
    %v1193 = vunpack.c.l.s4 1966171168
    %v1194 = vunpack.c.0.s8 %v1193
    %v1195 = vlaneseq
    %v1196 = vshrl.u32 %v1195, 7
    %v1197 = vsub.s32 %v1194, %v1196
    %v1198 = vrot.slane %v1191, %v1197
    %v1200 = vunpack.c.l.s4 1966171168
    %v1201 = vunpack.c.0.s8 %v1200
    %v1202 = vlaneseq
    %v1203 = vshrl.u32 %v1202, 7
    %v1204 = vsub.s32 %v1201, %v1203
    %v1205 = vrot.slane %v1190, %v1204
    %v1206 = vcombine.low %v1198, %v1205
    %v1209 = vpack.c.bf16 %v1206, %v1166
    %v1211 = vsel %vm585, %v1209, 0
    %1213 = vmatprep.subr.bf16.mxu0 0
    %1214 = vmatpush1.bf16.msra.mxu0 %v571
    %1215 = vmatprep.subr.bf16.mxu0 0
    %1216 = vmatpush1.bf16.msra.mxu0 %v572
    %1217 = vmatprep.subr.bf16.mxu0 0
    %1218 = vmatpush1.bf16.msra.mxu0 %v573
    %1219 = vmatprep.subr.bf16.mxu0 0
    %1220 = vmatpush1.bf16.msra.mxu0 %v574
    %1221 = vmatprep.subr.bf16.mxu0 0
    %1222 = vmatpush1.bf16.msra.mxu0 %v575
    %1223 = vmatprep.subr.bf16.mxu0 0
    %1224 = vmatpush1.bf16.msra.mxu0 %v576
    %1225 = vmatprep.subr.bf16.mxu0 0
    %1226 = vmatpush1.bf16.msra.mxu0 %v577
    %1227 = vmatprep.subr.bf16.mxu0 0
    %1228 = vmatpush1.bf16.msra.mxu0 0
    %1229 = vmatprep.subr.bf16.mxu0 0
    %1230 = vmatpush1.bf16.msra.mxu0 0
    %1231 = vmatprep.subr.bf16.mxu0 0
    %1232 = vmatpush1.bf16.msra.mxu0 0
    %1233 = vmatprep.subr.bf16.mxu0 0
    %1234 = vmatpush1.bf16.msra.mxu0 0
    %1235 = vmatprep.subr.bf16.mxu0 0
    %1236 = vmatpush1.bf16.msra.mxu0 0
    %1237 = vmatprep.subr.bf16.mxu0 0
    %1238 = vmatpush1.bf16.msra.mxu0 0
    %1239 = vmatprep.subr.bf16.mxu0 0
    %1240 = vmatpush1.bf16.msra.mxu0 0
    %1241 = vmatprep.subr.bf16.mxu0 0
    %1242 = vmatpush1.bf16.msra.mxu0 0
    %1243 = vmatprep.subr.bf16.mxu0 0
    %1244 = vmatpush1.bf16.msra.mxu0 0
    %1245 = vmatprep.mubr.bf16.mxu0 0
    %1246 = vmatmul.mubr.bf16.gmra.mrb[0].mxu0 %v1211
    %v1247 = vpop.f32.mrb[0].mxu0
    %v1248 = vadd.f32 0.0, %v1247
    %v1249 = vpop.f32.mrb[0].mxu0
    %v1250 = vpop.f32.mrb[0].mxu0
    %v1251 = vadd.f32 0.0, %v1250
    %v1252 = vpop.f32.mrb[0].mxu0
    %1253 = vdwg.mxu0
    %v1256 = vcombine.high %v1248, %v1248
    %v1258 = vunpack.c.l.s4 1966171168
    %v1259 = vunpack.c.0.s8 %v1258
    %v1260 = vlaneseq
    %v1261 = vshrl.u32 %v1260, 7
    %v1262 = vsub.s32 %v1259, %v1261
    %v1263 = vrot.slane %v1248, %v1262
    %v1265 = vunpack.c.l.s4 1966171168
    %v1266 = vunpack.c.0.s8 %v1265
    %v1267 = vlaneseq
    %v1268 = vshrl.u32 %v1267, 7
    %v1269 = vsub.s32 %v1266, %v1268
    %v1270 = vrot.slane %v1256, %v1269
    %v1271 = vcombine.high %v1263, %v1263
    %v1272 = vcombine.high %v1270, %v1270
    %v1274 = vunpack.c.l.s4 1966171168
    %v1275 = vunpack.c.0.s8 %v1274
    %v1276 = vlaneseq
    %v1277 = vshrl.u32 %v1276, 7
    %v1278 = vsub.s32 %v1275, %v1277
    %v1279 = vrot.slane %v1263, %v1278
    %v1281 = vunpack.c.l.s4 1966171168
    %v1282 = vunpack.c.0.s8 %v1281
    %v1283 = vlaneseq
    %v1284 = vshrl.u32 %v1283, 7
    %v1285 = vsub.s32 %v1282, %v1284
    %v1286 = vrot.slane %v1270, %v1285
    %v1288 = vunpack.c.l.s4 1966171168
    %v1289 = vunpack.c.0.s8 %v1288
    %v1290 = vlaneseq
    %v1291 = vshrl.u32 %v1290, 7
    %v1292 = vsub.s32 %v1289, %v1291
    %v1293 = vrot.slane %v1271, %v1292
    %v1295 = vunpack.c.l.s4 1966171168
    %v1296 = vunpack.c.0.s8 %v1295
    %v1297 = vlaneseq
    %v1298 = vshrl.u32 %v1297, 7
    %v1299 = vsub.s32 %v1296, %v1298
    %v1300 = vrot.slane %v1272, %v1299
    %v1301 = vcombine.high %v1279, %v1279
    %v1302 = vcombine.high %v1286, %v1286
    %v1303 = vcombine.high %v1293, %v1293
    %v1304 = vcombine.high %v1300, %v1300
    %v1305 = vcombine.high %v1251, %v1251
    %v1307 = vunpack.c.l.s4 1966171168
    %v1308 = vunpack.c.0.s8 %v1307
    %v1309 = vlaneseq
    %v1310 = vshrl.u32 %v1309, 7
    %v1311 = vsub.s32 %v1308, %v1310
    %v1312 = vrot.slane %v1251, %v1311
    %v1314 = vunpack.c.l.s4 1966171168
    %v1315 = vunpack.c.0.s8 %v1314
    %v1316 = vlaneseq
    %v1317 = vshrl.u32 %v1316, 7
    %v1318 = vsub.s32 %v1315, %v1317
    %v1319 = vrot.slane %v1305, %v1318
    %v1320 = vcombine.high %v1312, %v1312
    %v1321 = vcombine.high %v1319, %v1319
    %v1323 = vunpack.c.l.s4 1966171168
    %v1324 = vunpack.c.0.s8 %v1323
    %v1325 = vlaneseq
    %v1326 = vshrl.u32 %v1325, 7
    %v1327 = vsub.s32 %v1324, %v1326
    %v1328 = vrot.slane %v1312, %v1327
    %v1330 = vunpack.c.l.s4 1966171168
    %v1331 = vunpack.c.0.s8 %v1330
    %v1332 = vlaneseq
    %v1333 = vshrl.u32 %v1332, 7
    %v1334 = vsub.s32 %v1331, %v1333
    %v1335 = vrot.slane %v1319, %v1334
    %v1337 = vunpack.c.l.s4 1966171168
    %v1338 = vunpack.c.0.s8 %v1337
    %v1339 = vlaneseq
    %v1340 = vshrl.u32 %v1339, 7
    %v1341 = vsub.s32 %v1338, %v1340
    %v1342 = vrot.slane %v1320, %v1341
    %v1344 = vunpack.c.l.s4 1966171168
    %v1345 = vunpack.c.0.s8 %v1344
    %v1346 = vlaneseq
    %v1347 = vshrl.u32 %v1346, 7
    %v1348 = vsub.s32 %v1345, %v1347
    %v1349 = vrot.slane %v1321, %v1348
    %v1350 = vcombine.high %v1328, %v1328
    %v1351 = vcombine.high %v1342, %v1342
    %v1366 = vadd.f32 %v1279, %v770
    %v1367 = vadd.f32 %v1293, %v784
    %v1368 = vadd.f32 %v1301, %v792
    %v1369 = vadd.f32 %v1303, %v794
    %v1370 = vadd.f32 %v1286, %v777
    %v1371 = vadd.f32 %v1300, %v791
    %v1372 = vadd.f32 %v1302, %v793
    %v1373 = vadd.f32 %v1304, %v770
    %v1374 = vadd.f32 %v1328, %v784
    %v1375 = vadd.f32 %v1342, %v792
    %v1376 = vadd.f32 %v1350, %v794
    %v1377 = vadd.f32 %v1351, %v777
    %v1378 = vadd.f32 %v1335, %v791
    %v1379 = vadd.f32 %v1349, %v793
    %v1380 = vsub.f32 %v802, %v1366
    %v1381 = vsub.f32 %v803, %v1367
    %v1382 = vsub.f32 %v804, %v1368
    %v1383 = vsub.f32 %v805, %v1369
    %v1384 = vsub.f32 %v806, %v1370
    %v1385 = vsub.f32 %v807, %v1371
    %v1386 = vsub.f32 %v808, %v1372
    %v1387 = vsub.f32 %v809, %v1373
    %v1388 = vsub.f32 %v810, %v1374
    %v1389 = vsub.f32 %v811, %v1375
    %v1390 = vsub.f32 %v812, %v1376
    %v1391 = vsub.f32 %v813, %v1377
    %v1392 = vsub.f32 %v814, %v1378
    %v1393 = vsub.f32 %v815, %v1379
    %v1394 = vand.u32 2147483647, %v1380
    %v1395 = vand.u32 2147483647, %v1381
    %v1396 = vand.u32 2147483647, %v1382
    %v1397 = vand.u32 2147483647, %v1383
    %v1398 = vand.u32 2147483647, %v1384
    %v1399 = vand.u32 2147483647, %v1385
    %v1400 = vand.u32 2147483647, %v1386
    %v1401 = vand.u32 2147483647, %v1387
    %v1402 = vand.u32 2147483647, %v1388
    %v1403 = vand.u32 2147483647, %v1389
    %v1404 = vand.u32 2147483647, %v1390
    %v1405 = vand.u32 2147483647, %v1391
    %v1406 = vand.u32 2147483647, %v1392
    %v1407 = vand.u32 2147483647, %v1393
    %vm1410 = vcmask 1041409
    %v1411 = vsel %vm1410, %v354, %v353
    %vm1413 = vcmask 123904
    %1414 = vst.msk [vmem:[#allocation2] sm:$0x3] %vm1413, %v1411
    %v1417 = vsel %vm1410, %v1021, %v1020
    %1419 = vst.msk [vmem:[#allocation4] sm:$0x3] %vm1413, %v1417
    %v1434 = vcombine.low %v1394, %v1395
    %v1435 = vcombine.low %v1396, %v1397
    %v1436 = vcombine.low %v1398, %v1399
    %v1438 = vunpack.c.l.s4 1966171168
    %v1439 = vunpack.c.0.s8 %v1438
    %v1440 = vlaneseq
    %v1441 = vshrl.u32 %v1440, 7
    %v1442 = vsub.s32 %v1439, %v1441
    %v1443 = vrot.slane %v1434, %v1442
    %v1445 = vunpack.c.l.s4 1966171168
    %v1446 = vunpack.c.0.s8 %v1445
    %v1447 = vlaneseq
    %v1448 = vshrl.u32 %v1447, 7
    %v1449 = vsub.s32 %v1446, %v1448
    %v1450 = vrot.slane %v1435, %v1449
    %v1452 = vunpack.c.l.s4 1966171168
    %v1453 = vunpack.c.0.s8 %v1452
    %v1454 = vlaneseq
    %v1455 = vshrl.u32 %v1454, 7
    %v1456 = vsub.s32 %v1453, %v1455
    %v1457 = vrot.slane %v1436, %v1456
    %v1459 = vunpack.c.l.s4 1966171168
    %v1460 = vunpack.c.0.s8 %v1459
    %v1461 = vlaneseq
    %v1462 = vshrl.u32 %v1461, 7
    %v1463 = vsub.s32 %v1460, %v1462
    %v1464 = vrot.slane %v1400, %v1463
    %v1465 = vcombine.low %v1443, %v1450
    %v1466 = vcombine.low %v1457, %v1464
    %v1468 = vunpack.c.l.s4 1966171168
    %v1469 = vunpack.c.0.s8 %v1468
    %v1470 = vlaneseq
    %v1471 = vshrl.u32 %v1470, 7
    %v1472 = vsub.s32 %v1469, %v1471
    %v1473 = vrot.slane %v1465, %v1472
    %v1475 = vunpack.c.l.s4 1966171168
    %v1476 = vunpack.c.0.s8 %v1475
    %v1477 = vlaneseq
    %v1478 = vshrl.u32 %v1477, 7
    %v1479 = vsub.s32 %v1476, %v1478
    %v1480 = vrot.slane %v1466, %v1479
    %v1481 = vcombine.low %v1473, %v1480
    %v1482 = vcombine.low %v1401, %v1402
    %v1483 = vcombine.low %v1403, %v1404
    %v1484 = vcombine.low %v1405, %v1406
    %v1486 = vunpack.c.l.s4 1966171168
    %v1487 = vunpack.c.0.s8 %v1486
    %v1488 = vlaneseq
    %v1489 = vshrl.u32 %v1488, 7
    %v1490 = vsub.s32 %v1487, %v1489
    %v1491 = vrot.slane %v1482, %v1490
    %v1493 = vunpack.c.l.s4 1966171168
    %v1494 = vunpack.c.0.s8 %v1493
    %v1495 = vlaneseq
    %v1496 = vshrl.u32 %v1495, 7
    %v1497 = vsub.s32 %v1494, %v1496
    %v1498 = vrot.slane %v1483, %v1497
    %v1500 = vunpack.c.l.s4 1966171168
    %v1501 = vunpack.c.0.s8 %v1500
    %v1502 = vlaneseq
    %v1503 = vshrl.u32 %v1502, 7
    %v1504 = vsub.s32 %v1501, %v1503
    %v1505 = vrot.slane %v1484, %v1504
    %v1507 = vunpack.c.l.s4 1966171168
    %v1508 = vunpack.c.0.s8 %v1507
    %v1509 = vlaneseq
    %v1510 = vshrl.u32 %v1509, 7
    %v1511 = vsub.s32 %v1508, %v1510
    %v1512 = vrot.slane %v1407, %v1511
    %v1513 = vcombine.low %v1491, %v1498
    %v1514 = vcombine.low %v1505, %v1512
    %v1516 = vunpack.c.l.s4 1966171168
    %v1517 = vunpack.c.0.s8 %v1516
    %v1518 = vlaneseq
    %v1519 = vshrl.u32 %v1518, 7
    %v1520 = vsub.s32 %v1517, %v1519
    %v1521 = vrot.slane %v1513, %v1520
    %v1523 = vunpack.c.l.s4 1966171168
    %v1524 = vunpack.c.0.s8 %v1523
    %v1525 = vlaneseq
    %v1526 = vshrl.u32 %v1525, 7
    %v1527 = vsub.s32 %v1524, %v1526
    %v1528 = vrot.slane %v1514, %v1527
    %v1529 = vcombine.low %v1521, %v1528
    %v1532 = vmul.f32 %v286, %v1481
    %v1533 = vmul.f32 %v287, %v1529
    %1536 = vrot.lane.b32.xlu0 %v1532, 112
    %v1537 = vpop.permute.xlu0 %1536
    %1538 = vrot.lane.b32.xlu0 %v1533, 112
    %v1539 = vpop.permute.xlu0 %1538
    %v1542 = vadd.f32 %v1532, %v1537
    %v1543 = vadd.f32 %v1533, %v1539
    %1544 = vrot.lane.b32.xlu0 %v1532, 96
    %v1545 = vpop.permute.xlu0 %1544
    %1546 = vrot.lane.b32.xlu0 %v1533, 96
    %v1547 = vpop.permute.xlu0 %1546
    %v1550 = vadd.f32 %v1542, %v1545
    %v1551 = vadd.f32 %v1543, %v1547
    %1552 = vrot.lane.b32.xlu0 %v1532, 80
    %v1553 = vpop.permute.xlu0 %1552
    %1554 = vrot.lane.b32.xlu0 %v1533, 80
    %v1555 = vpop.permute.xlu0 %1554
    %v1558 = vadd.f32 %v1550, %v1553
    %v1559 = vadd.f32 %v1551, %v1555
    %1560 = vrot.lane.b32.xlu0 %v1532, 64
    %v1561 = vpop.permute.xlu0 %1560
    %1562 = vrot.lane.b32.xlu0 %v1533, 64
    %v1563 = vpop.permute.xlu0 %1562
    %v1566 = vadd.f32 %v1558, %v1561
    %v1567 = vadd.f32 %v1559, %v1563
    %1568 = vrot.lane.b32.xlu0 %v1532, 48
    %v1569 = vpop.permute.xlu0 %1568
    %1570 = vrot.lane.b32.xlu0 %v1533, 48
    %v1571 = vpop.permute.xlu0 %1570
    %v1574 = vadd.f32 %v1566, %v1569
    %v1575 = vadd.f32 %v1567, %v1571
    %1576 = vrot.lane.b32.xlu0 %v1532, 32
    %v1577 = vpop.permute.xlu0 %1576
    %1578 = vrot.lane.b32.xlu0 %v1533, 32
    %v1579 = vpop.permute.xlu0 %1578
    %v1582 = vadd.f32 %v1574, %v1577
    %v1583 = vadd.f32 %v1575, %v1579
    %v1584 = vsel %vm338, %v1582, 0.0
    %v1585 = vrot.slane %v1584, 4
    %v1586 = vadd.f32 %v1584, %v1585
    %v1587 = vrot.slane %v1586, 2
    %v1588 = vadd.f32 %v1586, %v1587
    %v1589 = vrot.slane %v1588, 1
    %v1590 = vadd.f32 %v1588, %v1589
    %v1591 = vsel %vm338, %v1583, 0.0
    %v1592 = vrot.slane %v1591, 4
    %v1593 = vadd.f32 %v1591, %v1592
    %v1594 = vrot.slane %v1593, 2
    %v1595 = vadd.f32 %v1593, %v1594
    %v1596 = vrot.slane %v1595, 1
    %v1597 = vadd.f32 %v1595, %v1596
    %v1598 = vmul.f32 %v1590, 0.020408163
    %v1599 = vmul.f32 %v1597, 0.020408163
    %v1602 = vsel %vm1410, %v1599, %v1598
    %1604 = vst.msk [vmem:[#allocation6] sm:$0x3] %vm1413, %v1602
    %v1605 = vmul.f32 %v954, %v1481
    %v1606 = vmul.f32 %v955, %v1529
    %1609 = vrot.lane.b32.xlu0 %v1605, 112
    %v1610 = vpop.permute.xlu0 %1609
    %1611 = vrot.lane.b32.xlu0 %v1606, 112
    %v1612 = vpop.permute.xlu0 %1611
    %v1615 = vadd.f32 %v1605, %v1610
    %v1616 = vadd.f32 %v1606, %v1612
    %1617 = vrot.lane.b32.xlu0 %v1605, 96
    %v1618 = vpop.permute.xlu0 %1617
    %1619 = vrot.lane.b32.xlu0 %v1606, 96
    %v1620 = vpop.permute.xlu0 %1619
    %v1623 = vadd.f32 %v1615, %v1618
    %v1624 = vadd.f32 %v1616, %v1620
    %1625 = vrot.lane.b32.xlu0 %v1605, 80
    %v1626 = vpop.permute.xlu0 %1625
    %1627 = vrot.lane.b32.xlu0 %v1606, 80
    %v1628 = vpop.permute.xlu0 %1627
    %v1631 = vadd.f32 %v1623, %v1626
    %v1632 = vadd.f32 %v1624, %v1628
    %1633 = vrot.lane.b32.xlu0 %v1605, 64
    %v1634 = vpop.permute.xlu0 %1633
    %1635 = vrot.lane.b32.xlu0 %v1606, 64
    %v1636 = vpop.permute.xlu0 %1635
    %v1639 = vadd.f32 %v1631, %v1634
    %v1640 = vadd.f32 %v1632, %v1636
    %1641 = vrot.lane.b32.xlu0 %v1605, 48
    %v1642 = vpop.permute.xlu0 %1641
    %1643 = vrot.lane.b32.xlu0 %v1606, 48
    %v1644 = vpop.permute.xlu0 %1643
    %v1647 = vadd.f32 %v1639, %v1642
    %v1648 = vadd.f32 %v1640, %v1644
    %1649 = vrot.lane.b32.xlu0 %v1605, 32
    %v1650 = vpop.permute.xlu0 %1649
    %1651 = vrot.lane.b32.xlu0 %v1606, 32
    %v1652 = vpop.permute.xlu0 %1651
    %v1655 = vadd.f32 %v1647, %v1650
    %v1656 = vadd.f32 %v1648, %v1652
    %v1657 = vsel %vm338, %v1655, 0.0
    %v1658 = vrot.slane %v1657, 4
    %v1659 = vadd.f32 %v1657, %v1658
    %v1660 = vrot.slane %v1659, 2
    %v1661 = vadd.f32 %v1659, %v1660
    %v1662 = vrot.slane %v1661, 1
    %v1663 = vadd.f32 %v1661, %v1662
    %v1664 = vsel %vm338, %v1656, 0.0
    %v1665 = vrot.slane %v1664, 4
    %v1666 = vadd.f32 %v1664, %v1665
    %v1667 = vrot.slane %v1666, 2
    %v1668 = vadd.f32 %v1666, %v1667
    %v1669 = vrot.slane %v1668, 1
    %v1670 = vadd.f32 %v1668, %v1669
    %v1671 = vmul.f32 %v1663, 0.020408163
    %v1672 = vmul.f32 %v1670, 0.020408163
    %v1675 = vsel %vm1410, %v1672, %v1671
    %1677 = vst.msk [vmem:[#allocation7] sm:$0x3] %vm1413, %v1675
    // Predicated region
    $region26: #{doublenet_forward.1} parent=1 // pred_check
      _
    $region27: #{doublenet_forward.1} parent=1 // pred_check_branch
      %1679 = sbr.rel (0) target = $region29
    $region28: #{doublenet_forward.1} parent=1 // pred_region
      %s1681 = ssub.s32 32, 32
      %1682 = vsyncadd [#allocation3], %s1681
      %s1684 = sshll.u32 [#allocation2], 4
      %s1685 = int_to_ptr.vmem [resolvable:$true] %s1684
      %1687 = dma.vmem_to_hbm [thread:$0]  %s1685, 32, %s6, [#allocation3]
    $region29: #{doublenet_forward.1} parent=1 // pred_fallthru
      _
    // Predicated region
    $region30: #{doublenet_forward.1} parent=1 // pred_check
      _
    $region31: #{doublenet_forward.1} parent=1 // pred_check_branch
      %1689 = sbr.rel (0) target = $region33
    $region32: #{doublenet_forward.1} parent=1 // pred_region
      %s1691 = ssub.s32 32, 32
      %1692 = vsyncadd [#allocation5], %s1691
      %s1694 = sshll.u32 [#allocation4], 4
      %s1695 = int_to_ptr.vmem [resolvable:$true] %s1694
      %1697 = dma.vmem_to_hbm [thread:$0]  %s1695, 32, %s7, [#allocation5]
    $region33: #{doublenet_forward.1} parent=1 // pred_fallthru
      _
    // Predicated region
    $region34: #{doublenet_forward.1} parent=1 // pred_check
      _
    $region35: #{doublenet_forward.1} parent=1 // pred_check_branch
      %1699 = sbr.rel (0) target = $region37
    $region36: #{doublenet_forward.1} parent=1 // pred_region
      %s1701 = ssub.s32 32, 32
      %1702 = vsyncadd [#allocation5], %s1701
      %s1704 = sshll.u32 [#allocation6], 4
      %s1705 = int_to_ptr.vmem [resolvable:$true] %s1704
      %1707 = dma.vmem_to_hbm [thread:$0]  %s1705, 32, %s8, [#allocation5]
    $region37: #{doublenet_forward.1} parent=1 // pred_fallthru
      _
    // Predicated region
    $region38: #{doublenet_forward.1} parent=1 // pred_check
      _
    $region39: #{doublenet_forward.1} parent=1 // pred_check_branch
      %1709 = sbr.rel (0) target = $region41
    $region40: #{doublenet_forward.1} parent=1 // pred_region
      %s1711 = ssub.s32 32, 32
      %1712 = vsyncadd [#allocation8], %s1711
      %s1714 = sshll.u32 [#allocation7], 4
      %s1715 = int_to_ptr.vmem [resolvable:$true] %s1714
      %1717 = dma.vmem_to_hbm [thread:$0]  %s1715, 32, %s9, [#allocation8]
    $region41: #{doublenet_forward.1} parent=1 // pred_fallthru
      _
    // Predicated region
    $region42: #{doublenet_forward.1} parent=1 // pred_check
      _
    $region43: #{doublenet_forward.1} parent=1 // pred_check_branch
      %1719 = sbr.rel (0) target = $region45
    $region44: #{doublenet_forward.1} parent=1 // pred_region
      %1720 = dma.done [#allocation3], 32
    $region45: #{doublenet_forward.1} parent=1 // pred_fallthru
      _
    // Predicated region
    $region46: #{doublenet_forward.1} parent=1 // pred_check
      _
    $region47: #{doublenet_forward.1} parent=1 // pred_check_branch
      %1722 = sbr.rel (0) target = $region49
    $region48: #{doublenet_forward.1} parent=1 // pred_region
      %1723 = dma.done [#allocation5], 32
    $region49: #{doublenet_forward.1} parent=1 // pred_fallthru
      _
    // Predicated region
    $region50: #{doublenet_forward.1} parent=1 // pred_check
      _
    $region51: #{doublenet_forward.1} parent=1 // pred_check_branch
      %1725 = sbr.rel (0) target = $region53
    $region52: #{doublenet_forward.1} parent=1 // pred_region
      %1726 = dma.done [#allocation5], 32
    $region53: #{doublenet_forward.1} parent=1 // pred_fallthru
      _
    // Predicated region
    $region54: #{doublenet_forward.1} parent=1 // pred_check
      _
    $region55: #{doublenet_forward.1} parent=1 // pred_check_branch
      %1728 = sbr.rel (0) target = $region57
    $region56: #{doublenet_forward.1} parent=1 // pred_region
      %1729 = dma.done [#allocation8], 32
    $region57: #{doublenet_forward.1} parent=1 // pred_fallthru
      _
    %1730 = vsyncpa [#allocation3], 1
    %1731 = vsyncpa [#allocation5], 1
    %1732 = vsyncpa [#allocation8], 1

</llo_original>
